<compile_context>
chip_gen: v7x
topology: tpu7x:2x2x1
jax: 0.10.0
libtpu: 0.0.40
codegen_flags: <defaults>
</compile_context>

<pallas_src>
import functools

import jax
import jax.numpy as jnp
from jax.experimental import pallas as pl
from jax.experimental.pallas import tpu as pltpu


def _round_up(a, m):
    return -(-a // m) * m


# ---------------------------------------------------------------------------
# Pallas kernel: XQKVAttentionM forward (attention across heads, per token).
#
# Packed layouts (P tokens per row, E = H*D features per token):
#   x tile      : (TM, P*E)                      cols (p, e)
#   qkv = x @ W : (TM, 3*P*E)   [QM | K | V]
#     QM        : cols (p, h1, d)    (M already folded in)
#     K, V      : cols (h2, p, d)    (head-major so per-h2 slices are contiguous)
#   csel (P*D, P*H*D): expands (p, d)  -> (p, h1, d)   (0/1 selector, MXU)
#   dsum (P*H*D, P*H): sums   (p,h1,d) -> (p, h1)      (0/1 selector, MXU)
#   aexp (P*H, P*H*D): expands (p,h1)  -> (p, h1, d)   (= dsum.T)
# ---------------------------------------------------------------------------
def _xqkv_fwd_kernel(x_ref, w_ref, b_ref, csel_ref, dsum_ref, aexp_ref,
                     out_ref, *res_refs, num_heads, head_dim, packing,
                     use_softmax, approx_reciprocal, emit_residuals,
                     matmul_dtype):
    H, D, P = num_heads, head_dim, packing
    PE = P * H * D
    PD = P * D

    x = x_ref[...]
    if matmul_dtype is not None:
        x = x.astype(matmul_dtype)          # cast inside the kernel (no HBM pass)

    # Fused packed projection on the MXU, f32 accumulation.
    qkv = jnp.dot(x, w_ref[...], preferred_element_type=jnp.float32)
    qkv = qkv + b_ref[...]

    qm = qkv[:, 0:PE]                        # (TM, P*E)  cols (p, h1, d)
    kk = qkv[:, PE:2 * PE]                   # (TM, P*E)  cols (h2, p, d)
    vv = qkv[:, 2 * PE:3 * PE]               # (TM, P*E)  cols (h2, p, d)

    csel = csel_ref[...]
    dsum = dsum_ref[...]
    aexp = aexp_ref[...]

    # Logits per key head h2, dense over (p, h1): selector matmuls keep the
    # reduction on the MXU instead of H*H narrow lane-reduces on the XLU.
    logits = []
    for h2 in range(H):
        k_h = kk[:, h2 * PD:(h2 + 1) * PD]                       # (TM, P*D)
        k_exp = jnp.dot(k_h, csel, preferred_element_type=jnp.float32)
        logits.append(jnp.dot(qm * k_exp, dsum,
                              preferred_element_type=jnp.float32))  # (TM, P*H)

    if use_softmax:
        m = logits[0]
        for l in logits[1:]:
            m = jnp.maximum(m, l)
        exps = [jnp.exp(l - m) for l in logits]
        den = exps[0]
        for e in exps[1:]:
            den = den + e
        if approx_reciprocal:
            inv = pl.reciprocal(den, approx=True)   # EUP slot (flag-gated)
        else:
            inv = 1.0 / den                         # exact: primal == tangent math
        att = [e * inv for e in exps]
    else:
        att = logits

    # Output combine: out[(p,h1,d)] = sum_h2 att_h2[(p,h1)] * v[(h2,p,d)].
    out = None
    for h2 in range(H):
        v_h = vv[:, h2 * PD:(h2 + 1) * PD]                       # (TM, P*D)
        v_exp = jnp.dot(v_h, csel, preferred_element_type=jnp.float32)
        a_exp = jnp.dot(att[h2], aexp, preferred_element_type=jnp.float32)
        term = a_exp * v_exp
        out = term if out is None else out + term

    # Single lane-dense (128-lane for P=4) store, token-major (p, h1, d).
    out_ref[...] = out.astype(out_ref.dtype)

    if emit_residuals:
        qm_res, k_res, v_res, att_res = res_refs
        qm_res[...] = qm
        k_res[...] = kk
        v_res[...] = vv
        att_res[...] = jnp.concatenate(att, axis=-1)   # cols (h2, p, h1)


# ---------------------------------------------------------------------------
# One-time parameter preparation (hoisted out of the per-call path).
# ---------------------------------------------------------------------------
def prepare_xqkv_params(wq, bq, wk, bk, wv, bv, M, *, num_heads, packing=4,
                        matmul_dtype=jnp.bfloat16):
    E = wq.shape[0]
    H = num_heads
    D = E // H
    P = packing

    # Fold M into the Q projection: qm = x @ (Wq^T @ kron(I_H, M)) + bq @ kron(..).
    BD = jnp.kron(jnp.eye(H, dtype=jnp.float32), M.astype(jnp.float32))    # (E, E)
    wqm_t = wq.T.astype(jnp.float32) @ BD
    bqm = bq.astype(jnp.float32) @ BD

    # Packed QM block: cols (p, h1, d).
    w_q = jnp.kron(jnp.eye(P, dtype=jnp.float32), wqm_t)                    # (P*E, P*E)
    b_q = jnp.tile(bqm, P)

    # Packed K / V blocks: cols (h2, p, d) so per-h2 slices are contiguous.
    def pack_head_major(w_t, b):
        w_h = w_t.astype(jnp.float32).reshape(E, H, D)                      # (e, h, d)
        wp = jnp.einsum('pq,ehd->pehqd', jnp.eye(P, dtype=jnp.float32), w_h)
        wp = wp.reshape(P * E, H * P * D)
        bp = jnp.broadcast_to(b.astype(jnp.float32).reshape(H, 1, D),
                              (H, P, D)).reshape(H * P * D)
        return wp, bp

    w_k, b_k = pack_head_major(wk.T, bk)
    w_v, b_v = pack_head_major(wv.T, bv)

    w_all = jnp.concatenate([w_q, w_k, w_v], axis=1)                        # (P*E, 3*P*E)
    b_all = jnp.concatenate([b_q, b_k, b_v]).reshape(1, 3 * P * E)          # f32 bias
    if matmul_dtype is not None:
        w_all = w_all.astype(matmul_dtype)

    # 0/1 selector matrices (f32, exact on the MXU).
    eyeD = jnp.eye(D, dtype=jnp.float32)
    csel = jnp.kron(jnp.eye(P, dtype=jnp.float32),
                    jnp.broadcast_to(eyeD[:, None, :], (D, H, D)).reshape(D, H * D))
    dsum = jnp.kron(jnp.eye(P * H, dtype=jnp.float32), jnp.ones((D, 1), jnp.float32))
    aexp = dsum.T

    return {"w_all": w_all, "b_all": b_all, "csel": csel, "dsum": dsum,
            "aexp": aexp}


# ---------------------------------------------------------------------------
# Wrapper: XQKVAttentionM forward via the Pallas kernel.
# ---------------------------------------------------------------------------
def xqkv_attention_m(x, wq, bq, wk, bk, wv, bv, M, *, num_heads,
                     use_softmax=True, packing=4, tile_rows=1024,
                     matmul_dtype=jnp.bfloat16, approx_reciprocal=False,
                     out_dtype=None, prepared=None, return_residuals=False):
    """XQKVAttentionM forward. x: (B, N, E) -> (B, N, E).

    tile_rows counts PACKED rows (each row holds `packing` tokens).
    NOTE(v6e/v7x): packing=8 gives a full 256-wide MXU contraction dim.
    """
    B, N, E = x.shape
    H = num_heads
    D = E // H
    P = packing
    PE = P * E
    rows = B * N

    if prepared is None:
        prepared = prepare_xqkv_params(wq, bq, wk, bk, wv, bv, M,
                                       num_heads=H, packing=P,
                                       matmul_dtype=matmul_dtype)
    w_all = prepared["w_all"]
    b_all = prepared["b_all"]
    csel = prepared["csel"]
    dsum = prepared["dsum"]
    aexp = prepared["aexp"]

    # Pack P tokens per row (free contiguous reshape; tiny pad only if rows%P).
    x2 = x.reshape(rows, E)
    pad_tok = (-rows) % P
    if pad_tok:
        x2 = jnp.pad(x2, ((0, pad_tok), (0, 0)))
    R = x2.shape[0] // P
    xp = x2.reshape(R, PE)

    # Row tile: big tiles for HBM roofline, but always >=2 tiles when possible
    # so both v7x TensorCores get work; a single full-array block for tiny R.
    tm = min(tile_rows, _round_up(max(1, -(-R // 2)), 8))
    tm = _round_up(tm, 8)
    if tm >= R:
        tm = R
    grid_rows = -(-R // tm)   # partial last tile handled by Pallas boundary masking

    out_dt = x.dtype if out_dtype is None else out_dtype
    out_shapes = [jax.ShapeDtypeStruct((R, PE), out_dt)]
    out_specs = [pl.BlockSpec((tm, PE), lambda i: (i, 0))]
    if return_residuals:
        out_shapes += [jax.ShapeDtypeStruct((R, PE), jnp.float32),        # qm (p,h1,d)
                       jax.ShapeDtypeStruct((R, PE), jnp.float32),        # k  (h2,p,d)
                       jax.ShapeDtypeStruct((R, PE), jnp.float32),        # v  (h2,p,d)
                       jax.ShapeDtypeStruct((R, H * P * H), jnp.float32)]  # att (h2,p,h1)
        out_specs += [pl.BlockSpec((tm, PE), lambda i: (i, 0)),
                      pl.BlockSpec((tm, PE), lambda i: (i, 0)),
                      pl.BlockSpec((tm, PE), lambda i: (i, 0)),
                      pl.BlockSpec((tm, H * P * H), lambda i: (i, 0))]

    kernel = functools.partial(
        _xqkv_fwd_kernel, num_heads=H, head_dim=D, packing=P,
        use_softmax=use_softmax, approx_reciprocal=approx_reciprocal,
        emit_residuals=return_residuals, matmul_dtype=matmul_dtype)

    const = lambda i: (0, 0)   # weights/bias/selectors: same block every step

    # NOTE: weight/bias/selector specs could use pipeline_mode=pl.Buffered(1)
    # to drop their second buffer; at E=32 the VMEM saving is negligible.
    ret = pl.pallas_call(
        kernel,
        out_shape=tuple(out_shapes),
        grid=(grid_rows,),
        in_specs=[
            pl.BlockSpec((tm, PE), lambda i: (i, 0)),   # x (original dtype)
            pl.BlockSpec(w_all.shape, const),           # fused packed projection
            pl.BlockSpec(b_all.shape, const),           # fused bias (f32)
            pl.BlockSpec(csel.shape, const),
            pl.BlockSpec(dsum.shape, const),
            pl.BlockSpec(aexp.shape, const),
        ],
        out_specs=tuple(out_specs),
        compiler_params=pltpu.CompilerParams(
            dimension_semantics=("parallel",)),
    )(xp, w_all, b_all, csel, dsum, aexp)
    if not isinstance(ret, (list, tuple)):
        ret = (ret,)

    out = ret[0].reshape(R * P, E)[:rows].reshape(B, N, E)
    if not return_residuals:
        return out

    qm_p, k_p, v_p, att_p = ret[1:]
    qm = qm_p.reshape(R * P, H, D)[:rows]
    k_res = k_p.reshape(R, H, P, D).transpose(0, 2, 1, 3).reshape(R * P, H, D)[:rows]
    v_res = v_p.reshape(R, H, P, D).transpose(0, 2, 1, 3).reshape(R * P, H, D)[:rows]
    att = att_p.reshape(R, H, P, H).transpose(0, 2, 3, 1).reshape(R * P, H, H)[:rows]
    return out, (qm, k_res, v_res, att)


# ---------------------------------------------------------------------------
# Analytic VJP consuming the Pallas residuals (no forward recompute).
# TODO(synk): this backward is plain JAX; a dedicated Pallas bwd kernel could
# move these FLOPs into Pallas as well.
# ---------------------------------------------------------------------------
def _xqkv_bwd_from_residuals(res, weights, g, *, use_softmax):
    qm, k, v, att = res            # (T,H,D), (T,H,D), (T,H,D), (T,H,H)
    wq, wk, wv, M = weights
    B, N, E = g.shape
    T = B * N
    H = att.shape[-1]
    D = E // H

    gt = g.reshape(T, H, D).astype(jnp.float32)
    da = jnp.einsum('thd,tkd->thk', gt, v)            # dL/datt
    dv = jnp.einsum('thk,thd->tkd', att, gt)
    if use_softmax:
        ds = att * (da - jnp.sum(att * da, axis=-1, keepdims=True))
    else:
        ds = da
    dqm = jnp.einsum('thk,tke->the', ds, k)
    dk = jnp.einsum('thk,the->tke', ds, qm)
    dq = jnp.einsum('the,de->thd', dqm, M)            # dq = dqm @ M^T
    dx = (dq.reshape(T, E) @ wq.astype(jnp.float32)
          + dk.reshape(T, E) @ wk.astype(jnp.float32)
          + dv.reshape(T, E) @ wv.astype(jnp.float32))
    return dx.reshape(B, N, E).astype(g.dtype)


def _make_pallas_attn(attn_params, *, num_heads, use_softmax, packing,
                      tile_rows, matmul_dtype, approx_reciprocal):
    wq, bq, wk, bk, wv, bv, M = attn_params
    prepared = prepare_xqkv_params(wq, bq, wk, bk, wv, bv, M,
                                   num_heads=num_heads, packing=packing,
                                   matmul_dtype=matmul_dtype)

    def _fwd(x, want_res):
        return xqkv_attention_m(
            x, wq, bq, wk, bk, wv, bv, M, num_heads=num_heads,
            use_softmax=use_softmax, packing=packing, tile_rows=tile_rows,
            matmul_dtype=matmul_dtype, approx_reciprocal=approx_reciprocal,
            prepared=prepared, return_residuals=want_res)

    @jax.custom_vjp
    def attn(x):
        return _fwd(x, False)

    def attn_fwd(x):
        out, res = _fwd(x, True)          # Pallas forward also emits residuals
        return out, res

    def attn_bwd(res, g):
        return (_xqkv_bwd_from_residuals(res, (wq, wk, wv, M), g,
                                         use_softmax=use_softmax),)

    attn.defvjp(attn_fwd, attn_bwd)
    return attn


# ---------------------------------------------------------------------------
# Pure-JAX references.
# ---------------------------------------------------------------------------
def xqkv_attention_m_ref(x, wq, bq, wk, bk, wv, bv, M, *, num_heads,
                         use_softmax=True):
    B, N, E = x.shape
    D = E // num_heads
    q = (x @ wq.T + bq).reshape(B, N, num_heads, D)
    k = (x @ wk.T + bk).reshape(B, N, num_heads, D)
    v = (x @ wv.T + bv).reshape(B, N, num_heads, D)
    att = jnp.einsum('bnhd,de->bnhe', q, M)
    att = jnp.einsum('bnhe,bnke->bnhk', att, k)
    if use_softmax:
        att = jax.nn.softmax(att, axis=-1)
    out = jnp.einsum('bnhk,bnkd->bnhd', att, v)
    return out.reshape(B, N, E)


def hang_forward(x, attn_params, fc_w, fc_b, *, num_heads, use_softmax=True,
                 packing=4, tile_rows=1024, matmul_dtype=jnp.bfloat16,
                 approx_reciprocal=False):
    """HANG.forward: x (B, N, E) -> (B, N, E)."""
    c = x.shape[-1]
    attn = _make_pallas_attn(attn_params, num_heads=num_heads,
                             use_softmax=use_softmax, packing=packing,
                             tile_rows=tile_rows, matmul_dtype=matmul_dtype,
                             approx_reciprocal=approx_reciprocal)

    def scalar_h(xx):
        a = attn(xx)                            # Pallas attention forward
        y = (a @ fc_w.T + fc_b)[..., 0]         # fc + squeeze(-1) -> (B, N)
        h = jnp.sqrt(jnp.sum(y * y, axis=-1))   # torch.norm(p=2, dim=-1) -> (B,)
        return jnp.sum(h)

    # jacobian(_forward, x) is block-diagonal over the batch, so .sum(0) equals
    # the per-sample gradient dH_b/dx[b]; jax.grad of the summed scalar gives it.
    g = jax.grad(scalar_h)(x)                   # (B, N, E)
    # NOTE: c == x.shape[-1], so g[..., c:] is an EMPTY slice and the result is
    # just -g -- this mirrors the PyTorch module exactly.
    dx = g[..., c:]
    dv = -g[..., :c]
    return jnp.concatenate([dx, dv], axis=-1)


def hang_forward_ref(x, attn_params, fc_w, fc_b, *, num_heads, use_softmax=True):
    """Pure-JAX reference mirroring the PyTorch HANG.forward literally."""
    wq, bq, wk, bk, wv, bv, M = attn_params
    c = x.shape[-1]

    def _fwd(xx):
        a = xqkv_attention_m_ref(xx, wq, bq, wk, bk, wv, bv, M,
                                 num_heads=num_heads, use_softmax=use_softmax)
        y = (a @ fc_w.T + fc_b)[..., 0]
        return jnp.sqrt(jnp.sum(y * y, axis=-1))

    jac = jax.jacrev(_fwd)(x)                   # (B, B, N, E)
    g = jac.sum(0)
    return jnp.concatenate([g[..., c:], -g[..., :c]], axis=-1)


if __name__ == "__main__":
    # Small shapes consistent with the module: (batch, seq, embed_dim).
    B, N, E, H = 2, 8, 32, 4
    key = jax.random.PRNGKey(0)
    ks = jax.random.split(key, 11)

    x = jax.random.normal(ks[0], (B, N, E), dtype=jnp.float32)
    wq = jax.random.normal(ks[1], (E, E), dtype=jnp.float32) * 0.1
    bq = jax.random.normal(ks[2], (E,), dtype=jnp.float32) * 0.1
    wk = jax.random.normal(ks[3], (E, E), dtype=jnp.float32) * 0.1
    bk = jax.random.normal(ks[4], (E,), dtype=jnp.float32) * 0.1
    wv = jax.random.normal(ks[5], (E, E), dtype=jnp.float32) * 0.1
    bv = jax.random.normal(ks[6], (E,), dtype=jnp.float32) * 0.1
    M = jax.random.normal(ks[7], (E // H, E // H), dtype=jnp.float32)
    fc_w = jax.random.normal(ks[8], (1, E), dtype=jnp.float32) * 0.1
    fc_b = jax.random.normal(ks[9], (1,), dtype=jnp.float32) * 0.1
    attn_params = (wq, bq, wk, bk, wv, bv, M)

    # --- check 1: attention kernel, f32 MXU path, single-tile grid -----------
    out_f32 = xqkv_attention_m(x, *attn_params, num_heads=H,
                               matmul_dtype=jnp.float32)
    out_f32 = jax.block_until_ready(out_f32)
    ref_small = xqkv_attention_m_ref(x, *attn_params, num_heads=H)
    assert out_f32.shape == (B, N, E)
    err1 = float(jnp.max(jnp.abs(out_f32 - ref_small)))
    assert err1 < 2e-2, f"f32 attention mismatch: {err1}"

    # --- check 2: attention kernel, default bf16 MXU path, multi-tile grid ---
    Bb, Nb = 4, 1024                       # 4096 tokens -> 1024 packed rows, 2 tiles
    xb = jax.random.normal(ks[10], (Bb, Nb, E), dtype=jnp.float32)
    out_bf16 = xqkv_attention_m(xb, *attn_params, num_heads=H)
    out_bf16 = jax.block_until_ready(out_bf16)
    ref_big = xqkv_attention_m_ref(xb, *attn_params, num_heads=H)
    err2 = float(jnp.max(jnp.abs(out_bf16 - ref_big)))
    assert err2 < 1e-1, f"bf16 attention mismatch: {err2}"

    # --- check 3: full HANG forward (Pallas fwd + residual-based analytic bwd)
    out_hang = hang_forward(x, attn_params, fc_w, fc_b, num_heads=H)
    out_hang = jax.block_until_ready(out_hang)
    ref_hang = hang_forward_ref(x, attn_params, fc_w, fc_b, num_heads=H)
    assert out_hang.shape == (B, N, E)
    err3 = float(jnp.max(jnp.abs(out_hang - ref_hang)))
    assert err3 < 1e-1, f"HANG forward mismatch: {err3}"

    print("KERNEL_OK")
</pallas_src>

<mosaic_0001>
module attributes {stable_mosaic.version = 11 : i64} {
  func.func @_xqkv_fwd_kernel(%arg0: i32, %arg1: memref<4x128xf32, #tpu.memory_space<vmem>>, %arg2: memref<128x384xf32, #tpu.memory_space<vmem>>, %arg3: memref<1x384xf32, #tpu.memory_space<vmem>>, %arg4: memref<32x128xf32, #tpu.memory_space<vmem>>, %arg5: memref<128x16xf32, #tpu.memory_space<vmem>>, %arg6: memref<16x128xf32, #tpu.memory_space<vmem>>, %arg7: memref<4x128xf32, #tpu.memory_space<vmem>>) attributes {dimension_semantics = [#tpu.dimension_semantics<parallel>], iteration_bounds = array<i64: 1>, scalar_prefetch = 0 : i64, scratch_operands = 0 : i64, tpu.core_type = #tpu.core_type<tc>, window_params = [{transform_indices = @transform_0, window_bounds = array<i64: 4, 128>}, {pipeline_mode = #tpu.pipeline_mode<synchronous>, transform_indices = @transform_1, window_bounds = array<i64: 128, 384>}, {pipeline_mode = #tpu.pipeline_mode<synchronous>, transform_indices = @transform_2, window_bounds = array<i64: 1, 384>}, {pipeline_mode = #tpu.pipeline_mode<synchronous>, transform_indices = @transform_3, window_bounds = array<i64: 32, 128>}, {pipeline_mode = #tpu.pipeline_mode<synchronous>, transform_indices = @transform_4, window_bounds = array<i64: 128, 16>}, {pipeline_mode = #tpu.pipeline_mode<synchronous>, transform_indices = @transform_5, window_bounds = array<i64: 16, 128>}, {transform_indices = @transform_6, window_bounds = array<i64: 4, 128>}]} {
    %c0 = arith.constant 0 : index
    %c0_0 = arith.constant 0 : index
    %0 = vector.load %arg1[%c0, %c0_0] : memref<4x128xf32, #tpu.memory_space<vmem>>, vector<4x128xf32>
    %c0_1 = arith.constant 0 : index
    %c0_2 = arith.constant 0 : index
    %1 = vector.load %arg2[%c0_1, %c0_2] : memref<128x384xf32, #tpu.memory_space<vmem>>, vector<128x384xf32>
    %cst = arith.constant dense<0.000000e+00> : vector<4x384xf32>
    %2 = tpu.matmul %0, %1, %cst {dimension_numbers = #tpu.dot_dimension_numbers<[1], [0], [0], [1], [0, 0, 1, 1], [], []>} : vector<4x128xf32>, vector<128x384xf32>, vector<4x384xf32> -> vector<4x384xf32>
    %c0_3 = arith.constant 0 : index
    %c0_4 = arith.constant 0 : index
    %3 = vector.load %arg3[%c0_3, %c0_4] : memref<1x384xf32, #tpu.memory_space<vmem>>, vector<1x384xf32>
    %4 = vector.broadcast %3 : vector<1x384xf32> to vector<4x384xf32>
    %5 = arith.addf %2, %4 : vector<4x384xf32>
    %6 = vector.extract_strided_slice %5 {offsets = [0, 0], sizes = [4, 128], strides = [1, 1]} : vector<4x384xf32> to vector<4x128xf32>
    %7 = vector.extract_strided_slice %5 {offsets = [0, 128], sizes = [4, 128], strides = [1, 1]} : vector<4x384xf32> to vector<4x128xf32>
    %8 = vector.extract_strided_slice %5 {offsets = [0, 256], sizes = [4, 128], strides = [1, 1]} : vector<4x384xf32> to vector<4x128xf32>
    %c0_5 = arith.constant 0 : index
    %c0_6 = arith.constant 0 : index
    %9 = vector.load %arg4[%c0_5, %c0_6] : memref<32x128xf32, #tpu.memory_space<vmem>>, vector<32x128xf32>
    %c0_7 = arith.constant 0 : index
    %c0_8 = arith.constant 0 : index
    %10 = vector.load %arg5[%c0_7, %c0_8] : memref<128x16xf32, #tpu.memory_space<vmem>>, vector<128x16xf32>
    %c0_9 = arith.constant 0 : index
    %c0_10 = arith.constant 0 : index
    %11 = vector.load %arg6[%c0_9, %c0_10] : memref<16x128xf32, #tpu.memory_space<vmem>>, vector<16x128xf32>
    %12 = vector.extract_strided_slice %7 {offsets = [0, 0], sizes = [4, 32], strides = [1, 1]} : vector<4x128xf32> to vector<4x32xf32>
    %cst_11 = arith.constant dense<0.000000e+00> : vector<4x128xf32>
    %13 = tpu.matmul %12, %9, %cst_11 {dimension_numbers = #tpu.dot_dimension_numbers<[1], [0], [0], [1], [0, 0, 1, 1], [], []>} : vector<4x32xf32>, vector<32x128xf32>, vector<4x128xf32> -> vector<4x128xf32>
    %14 = arith.mulf %6, %13 : vector<4x128xf32>
    %cst_12 = arith.constant dense<0.000000e+00> : vector<4x16xf32>
    %15 = tpu.matmul %14, %10, %cst_12 {dimension_numbers = #tpu.dot_dimension_numbers<[1], [0], [0], [1], [0, 0, 1, 1], [], []>} : vector<4x128xf32>, vector<128x16xf32>, vector<4x16xf32> -> vector<4x16xf32>
    %16 = vector.extract_strided_slice %7 {offsets = [0, 32], sizes = [4, 32], strides = [1, 1]} : vector<4x128xf32> to vector<4x32xf32>
    %cst_13 = arith.constant dense<0.000000e+00> : vector<4x128xf32>
    %17 = tpu.matmul %16, %9, %cst_13 {dimension_numbers = #tpu.dot_dimension_numbers<[1], [0], [0], [1], [0, 0, 1, 1], [], []>} : vector<4x32xf32>, vector<32x128xf32>, vector<4x128xf32> -> vector<4x128xf32>
    %18 = arith.mulf %6, %17 : vector<4x128xf32>
    %cst_14 = arith.constant dense<0.000000e+00> : vector<4x16xf32>
    %19 = tpu.matmul %18, %10, %cst_14 {dimension_numbers = #tpu.dot_dimension_numbers<[1], [0], [0], [1], [0, 0, 1, 1], [], []>} : vector<4x128xf32>, vector<128x16xf32>, vector<4x16xf32> -> vector<4x16xf32>
    %20 = vector.extract_strided_slice %7 {offsets = [0, 64], sizes = [4, 32], strides = [1, 1]} : vector<4x128xf32> to vector<4x32xf32>
    %cst_15 = arith.constant dense<0.000000e+00> : vector<4x128xf32>
    %21 = tpu.matmul %20, %9, %cst_15 {dimension_numbers = #tpu.dot_dimension_numbers<[1], [0], [0], [1], [0, 0, 1, 1], [], []>} : vector<4x32xf32>, vector<32x128xf32>, vector<4x128xf32> -> vector<4x128xf32>
    %22 = arith.mulf %6, %21 : vector<4x128xf32>
    %cst_16 = arith.constant dense<0.000000e+00> : vector<4x16xf32>
    %23 = tpu.matmul %22, %10, %cst_16 {dimension_numbers = #tpu.dot_dimension_numbers<[1], [0], [0], [1], [0, 0, 1, 1], [], []>} : vector<4x128xf32>, vector<128x16xf32>, vector<4x16xf32> -> vector<4x16xf32>
    %24 = vector.extract_strided_slice %7 {offsets = [0, 96], sizes = [4, 32], strides = [1, 1]} : vector<4x128xf32> to vector<4x32xf32>
    %cst_17 = arith.constant dense<0.000000e+00> : vector<4x128xf32>
    %25 = tpu.matmul %24, %9, %cst_17 {dimension_numbers = #tpu.dot_dimension_numbers<[1], [0], [0], [1], [0, 0, 1, 1], [], []>} : vector<4x32xf32>, vector<32x128xf32>, vector<4x128xf32> -> vector<4x128xf32>
    %26 = arith.mulf %6, %25 : vector<4x128xf32>
    %cst_18 = arith.constant dense<0.000000e+00> : vector<4x16xf32>
    %27 = tpu.matmul %26, %10, %cst_18 {dimension_numbers = #tpu.dot_dimension_numbers<[1], [0], [0], [1], [0, 0, 1, 1], [], []>} : vector<4x128xf32>, vector<128x16xf32>, vector<4x16xf32> -> vector<4x16xf32>
    %28 = arith.maximumf %15, %19 : vector<4x16xf32>
    %29 = arith.maximumf %28, %23 : vector<4x16xf32>
    %30 = arith.maximumf %29, %27 : vector<4x16xf32>
    %31 = arith.subf %15, %30 : vector<4x16xf32>
    %32 = math.exp %31 : vector<4x16xf32>
    %33 = arith.subf %19, %30 : vector<4x16xf32>
    %34 = math.exp %33 : vector<4x16xf32>
    %35 = arith.subf %23, %30 : vector<4x16xf32>
    %36 = math.exp %35 : vector<4x16xf32>
    %37 = arith.subf %27, %30 : vector<4x16xf32>
    %38 = math.exp %37 : vector<4x16xf32>
    %39 = arith.addf %32, %34 : vector<4x16xf32>
    %40 = arith.addf %39, %36 : vector<4x16xf32>
    %41 = arith.addf %40, %38 : vector<4x16xf32>
    %cst_19 = arith.constant 1.000000e+00 : f32
    %42 = vector.broadcast %cst_19 : f32 to vector<4x16xf32>
    %43 = arith.divf %42, %41 : vector<4x16xf32>
    %44 = arith.mulf %32, %43 : vector<4x16xf32>
    %45 = arith.mulf %34, %43 : vector<4x16xf32>
    %46 = arith.mulf %36, %43 : vector<4x16xf32>
    %47 = arith.mulf %38, %43 : vector<4x16xf32>
    %48 = vector.extract_strided_slice %8 {offsets = [0, 0], sizes = [4, 32], strides = [1, 1]} : vector<4x128xf32> to vector<4x32xf32>
    %cst_20 = arith.constant dense<0.000000e+00> : vector<4x128xf32>
    %49 = tpu.matmul %48, %9, %cst_20 {dimension_numbers = #tpu.dot_dimension_numbers<[1], [0], [0], [1], [0, 0, 1, 1], [], []>} : vector<4x32xf32>, vector<32x128xf32>, vector<4x128xf32> -> vector<4x128xf32>
    %cst_21 = arith.constant dense<0.000000e+00> : vector<4x128xf32>
    %50 = tpu.matmul %44, %11, %cst_21 {dimension_numbers = #tpu.dot_dimension_numbers<[1], [0], [0], [1], [0, 0, 1, 1], [], []>} : vector<4x16xf32>, vector<16x128xf32>, vector<4x128xf32> -> vector<4x128xf32>
    %51 = arith.mulf %50, %49 : vector<4x128xf32>
    %52 = vector.extract_strided_slice %8 {offsets = [0, 32], sizes = [4, 32], strides = [1, 1]} : vector<4x128xf32> to vector<4x32xf32>
    %cst_22 = arith.constant dense<0.000000e+00> : vector<4x128xf32>
    %53 = tpu.matmul %52, %9, %cst_22 {dimension_numbers = #tpu.dot_dimension_numbers<[1], [0], [0], [1], [0, 0, 1, 1], [], []>} : vector<4x32xf32>, vector<32x128xf32>, vector<4x128xf32> -> vector<4x128xf32>
    %cst_23 = arith.constant dense<0.000000e+00> : vector<4x128xf32>
    %54 = tpu.matmul %45, %11, %cst_23 {dimension_numbers = #tpu.dot_dimension_numbers<[1], [0], [0], [1], [0, 0, 1, 1], [], []>} : vector<4x16xf32>, vector<16x128xf32>, vector<4x128xf32> -> vector<4x128xf32>
    %55 = arith.mulf %54, %53 : vector<4x128xf32>
    %56 = arith.addf %51, %55 : vector<4x128xf32>
    %57 = vector.extract_strided_slice %8 {offsets = [0, 64], sizes = [4, 32], strides = [1, 1]} : vector<4x128xf32> to vector<4x32xf32>
    %cst_24 = arith.constant dense<0.000000e+00> : vector<4x128xf32>
    %58 = tpu.matmul %57, %9, %cst_24 {dimension_numbers = #tpu.dot_dimension_numbers<[1], [0], [0], [1], [0, 0, 1, 1], [], []>} : vector<4x32xf32>, vector<32x128xf32>, vector<4x128xf32> -> vector<4x128xf32>
    %cst_25 = arith.constant dense<0.000000e+00> : vector<4x128xf32>
    %59 = tpu.matmul %46, %11, %cst_25 {dimension_numbers = #tpu.dot_dimension_numbers<[1], [0], [0], [1], [0, 0, 1, 1], [], []>} : vector<4x16xf32>, vector<16x128xf32>, vector<4x128xf32> -> vector<4x128xf32>
    %60 = arith.mulf %59, %58 : vector<4x128xf32>
    %61 = arith.addf %56, %60 : vector<4x128xf32>
    %62 = vector.extract_strided_slice %8 {offsets = [0, 96], sizes = [4, 32], strides = [1, 1]} : vector<4x128xf32> to vector<4x32xf32>
    %cst_26 = arith.constant dense<0.000000e+00> : vector<4x128xf32>
    %63 = tpu.matmul %62, %9, %cst_26 {dimension_numbers = #tpu.dot_dimension_numbers<[1], [0], [0], [1], [0, 0, 1, 1], [], []>} : vector<4x32xf32>, vector<32x128xf32>, vector<4x128xf32> -> vector<4x128xf32>
    %cst_27 = arith.constant dense<0.000000e+00> : vector<4x128xf32>
    %64 = tpu.matmul %47, %11, %cst_27 {dimension_numbers = #tpu.dot_dimension_numbers<[1], [0], [0], [1], [0, 0, 1, 1], [], []>} : vector<4x16xf32>, vector<16x128xf32>, vector<4x128xf32> -> vector<4x128xf32>
    %65 = arith.mulf %64, %63 : vector<4x128xf32>
    %66 = arith.addf %61, %65 : vector<4x128xf32>
    %c0_28 = arith.constant 0 : index
    %c0_29 = arith.constant 0 : index
    %67 = vector.load %arg7[%c0_28, %c0_29] : memref<4x128xf32, #tpu.memory_space<vmem>>, vector<4x128xf32>
    tpu.vector_store %arg7[%c0_28, %c0_29], %66 {strides = array<i32>} : memref<4x128xf32, #tpu.memory_space<vmem>>, vector<4x128xf32>,
    return
  }
  func.func @transform_0(%arg0: i32) -> (i32, i32) {
    %c0_i32 = arith.constant 0 : i32
    %c0_i32_0 = arith.constant 0 : i32
    return %arg0, %c0_i32 : i32, i32
  }
  func.func @transform_1(%arg0: i32) -> (i32, i32) {
    %c0_i32 = arith.constant 0 : i32
    %c0_i32_0 = arith.constant 0 : i32
    %c0_i32_1 = arith.constant 0 : i32
    return %c0_i32, %c0_i32_0 : i32, i32
  }
  func.func @transform_2(%arg0: i32) -> (i32, i32) {
    %c0_i32 = arith.constant 0 : i32
    %c0_i32_0 = arith.constant 0 : i32
    %c0_i32_1 = arith.constant 0 : i32
    return %c0_i32, %c0_i32_0 : i32, i32
  }
  func.func @transform_3(%arg0: i32) -> (i32, i32) {
    %c0_i32 = arith.constant 0 : i32
    %c0_i32_0 = arith.constant 0 : i32
    %c0_i32_1 = arith.constant 0 : i32
    return %c0_i32, %c0_i32_0 : i32, i32
  }
  func.func @transform_4(%arg0: i32) -> (i32, i32) {
    %c0_i32 = arith.constant 0 : i32
    %c0_i32_0 = arith.constant 0 : i32
    %c0_i32_1 = arith.constant 0 : i32
    return %c0_i32, %c0_i32_0 : i32, i32
  }
  func.func @transform_5(%arg0: i32) -> (i32, i32) {
    %c0_i32 = arith.constant 0 : i32
    %c0_i32_0 = arith.constant 0 : i32
    %c0_i32_1 = arith.constant 0 : i32
    return %c0_i32, %c0_i32_0 : i32, i32
  }
  func.func @transform_6(%arg0: i32) -> (i32, i32) {
    %c0_i32 = arith.constant 0 : i32
    %c0_i32_0 = arith.constant 0 : i32
    return %arg0, %c0_i32 : i32, i32
  }
}

</mosaic_0001>

<llo_original>
// kernel: tpu_custom_call.1
$region0: #{tpu_custom_call.1}
  #allocation0 [shape = 'u32[]', space=smem, size = 0x4, offset = 0x4, fixed_abs, tag = 'smem constant byte address 0x4 - core index']
  #allocation1 [shape = 'u32[144,128]{1,0:T(1,128)}', space=vmem, size = 0x12000, scoped, tag = 'internal scratch']
  %s0 = inlined_call_operand.vmem [shape: f32[4,128], index: 0, kind: input, shape index: {}]
  %s1 = inlined_call_operand.hbm [shape: f32[128,384], index: 1, kind: input, shape index: {}]
  %s2 = inlined_call_operand.vmem [shape: f32[1,384], index: 2, kind: input, shape index: {}]
  %s3 = inlined_call_operand.vmem [shape: f32[32,128], index: 3, kind: input, shape index: {}]
  %s4 = inlined_call_operand.vmem [shape: f32[128,16], index: 4, kind: input, shape index: {}]
  %s5 = inlined_call_operand.vmem [shape: f32[16,128], index: 5, kind: input, shape index: {}]
  %s6 = inlined_call_operand.hbm [shape: f32[4,128], index: 6, kind: output, shape index: {}]
  %s7 = sld [smem:[#allocation0]]
  $region38: #{tpu_custom_call.1} parent=0
    _
  %s9 = ssub.s32 1, %s7
  %s10 = scalar_select 0, %s9, %s7
  $region1: #{tpu_custom_call.1} parent=0
    #allocation2 [shape = 'u8[196608]{0}', space=vmem, size = 0x30000, scoped, tag = 'input window, operand 1, single buffered']
    #allocation3 [shape = 's32[1]{0}', space=sflag, size = 0x4, scoped, tag = 'scoped memory for tpu_custom_call.1']
    #allocation4 [shape = 's32[1]{0}', space=sflag, size = 0x4, scoped, tag = 'scoped memory for tpu_custom_call.1']
    #allocation5 [shape = 'u8[2048]{0}', space=vmem, size = 0x800, scoped, tag = 'output window, operand 0, single buffered']
    %11 = vsyncpa [#allocation3], 0
    %12 = vsyncpa [#allocation4], 0
    // Predicated region
    $region2: #{tpu_custom_call.1} parent=1 // pred_check
      _
    $region3: #{tpu_custom_call.1} parent=1 // pred_check_branch
      %14 = sbr.rel (0) target = $region5
    $region4: #{tpu_custom_call.1} parent=1 // pred_region
      _
    $region5: #{tpu_custom_call.1} parent=1 // pred_fallthru
      _
    // Predicated region
    $region6: #{tpu_custom_call.1} parent=1 // pred_check
      _
    $region7: #{tpu_custom_call.1} parent=1 // pred_check_branch
      %16 = sbr.rel (0) target = $region9
    $region8: #{tpu_custom_call.1} parent=1 // pred_region
      %s18 = ssub.s32 6144, 6144
      %19 = vsyncadd [#allocation3], %s18
      %s20 = sshll.u32 [#allocation2], 4
      %s21 = int_to_ptr.vmem [resolvable:$true] %s20
      %26 = dma.hbm_to_vmem [thread:$0]  %s1, 6144, %s21, [#allocation3], 384, 384, 24
    $region9: #{tpu_custom_call.1} parent=1 // pred_fallthru
      _
    // Predicated region
    $region10: #{tpu_custom_call.1} parent=1 // pred_check
      _
    $region11: #{tpu_custom_call.1} parent=1 // pred_check_branch
      %28 = sbr.rel (0) target = $region13
    $region12: #{tpu_custom_call.1} parent=1 // pred_region
      _
    $region13: #{tpu_custom_call.1} parent=1 // pred_fallthru
      _
    // Predicated region
    $region14: #{tpu_custom_call.1} parent=1 // pred_check
      _
    $region15: #{tpu_custom_call.1} parent=1 // pred_check_branch
      %30 = sbr.rel (0) target = $region17
    $region16: #{tpu_custom_call.1} parent=1 // pred_region
      _
    $region17: #{tpu_custom_call.1} parent=1 // pred_fallthru
      _
    // Predicated region
    $region18: #{tpu_custom_call.1} parent=1 // pred_check
      _
    $region19: #{tpu_custom_call.1} parent=1 // pred_check_branch
      %32 = sbr.rel (0) target = $region21
    $region20: #{tpu_custom_call.1} parent=1 // pred_region
      _
    $region21: #{tpu_custom_call.1} parent=1 // pred_fallthru
      _
    // Predicated region
    $region22: #{tpu_custom_call.1} parent=1 // pred_check
      _
    $region23: #{tpu_custom_call.1} parent=1 // pred_check_branch
      %34 = sbr.rel (0) target = $region25
    $region24: #{tpu_custom_call.1} parent=1 // pred_region
      _
    $region25: #{tpu_custom_call.1} parent=1 // pred_fallthru
      _
    // Predicated region
    $region26: #{tpu_custom_call.1} parent=1 // pred_check
      _
    $region27: #{tpu_custom_call.1} parent=1 // pred_check_branch
      %36 = sbr.rel (0) target = $region29
    $region28: #{tpu_custom_call.1} parent=1 // pred_region
      %37 = dma.done [#allocation3], 6144
    $region29: #{tpu_custom_call.1} parent=1 // pred_fallthru
      _
    %v38 = vld [vmem:[%s0] sm:$0xf]
    %v39 = vld [vmem:[#allocation2] sm:$0xff]
    %v40 = vld [vmem:[#allocation2 + $0x8] sm:$0xff]
    %v41 = vld [vmem:[#allocation2 + $0x10] sm:$0xff]
    %v42 = vld [vmem:[#allocation2 + $0x18] sm:$0xff]
    %v43 = vld [vmem:[#allocation2 + $0x20] sm:$0xff]
    %v44 = vld [vmem:[#allocation2 + $0x28] sm:$0xff]
    %v45 = vld [vmem:[#allocation2 + $0x30] sm:$0xff]
    %v46 = vld [vmem:[#allocation2 + $0x38] sm:$0xff]
    %v47 = vld [vmem:[#allocation2 + $0x40] sm:$0xff]
    %v48 = vld [vmem:[#allocation2 + $0x48] sm:$0xff]
    %v49 = vld [vmem:[#allocation2 + $0x50] sm:$0xff]
    %v50 = vld [vmem:[#allocation2 + $0x58] sm:$0xff]
    %v51 = vld [vmem:[#allocation2 + $0x60] sm:$0xff]
    %v52 = vld [vmem:[#allocation2 + $0x68] sm:$0xff]
    %v53 = vld [vmem:[#allocation2 + $0x70] sm:$0xff]
    %v54 = vld [vmem:[#allocation2 + $0x78] sm:$0xff]
    %v55 = vld [vmem:[#allocation2 + $0x80] sm:$0xff]
    %v56 = vld [vmem:[#allocation2 + $0x88] sm:$0xff]
    %v57 = vld [vmem:[#allocation2 + $0x90] sm:$0xff]
    %v58 = vld [vmem:[#allocation2 + $0x98] sm:$0xff]
    %v59 = vld [vmem:[#allocation2 + $0xa0] sm:$0xff]
    %v60 = vld [vmem:[#allocation2 + $0xa8] sm:$0xff]
    %v61 = vld [vmem:[#allocation2 + $0xb0] sm:$0xff]
    %v62 = vld [vmem:[#allocation2 + $0xb8] sm:$0xff]
    %v63 = vld [vmem:[#allocation2 + $0xc0] sm:$0xff]
    %v64 = vld [vmem:[#allocation2 + $0xc8] sm:$0xff]
    %v65 = vld [vmem:[#allocation2 + $0xd0] sm:$0xff]
    %v66 = vld [vmem:[#allocation2 + $0xd8] sm:$0xff]
    %v67 = vld [vmem:[#allocation2 + $0xe0] sm:$0xff]
    %v68 = vld [vmem:[#allocation2 + $0xe8] sm:$0xff]
    %v69 = vld [vmem:[#allocation2 + $0xf0] sm:$0xff]
    %v70 = vld [vmem:[#allocation2 + $0xf8] sm:$0xff]
    %v71 = vld [vmem:[#allocation2 + $0x100] sm:$0xff]
    %v72 = vld [vmem:[#allocation2 + $0x108] sm:$0xff]
    %v73 = vld [vmem:[#allocation2 + $0x110] sm:$0xff]
    %v74 = vld [vmem:[#allocation2 + $0x118] sm:$0xff]
    %v75 = vld [vmem:[#allocation2 + $0x120] sm:$0xff]
    %v76 = vld [vmem:[#allocation2 + $0x128] sm:$0xff]
    %v77 = vld [vmem:[#allocation2 + $0x130] sm:$0xff]
    %v78 = vld [vmem:[#allocation2 + $0x138] sm:$0xff]
    %v79 = vld [vmem:[#allocation2 + $0x140] sm:$0xff]
    %v80 = vld [vmem:[#allocation2 + $0x148] sm:$0xff]
    %v81 = vld [vmem:[#allocation2 + $0x150] sm:$0xff]
    %v82 = vld [vmem:[#allocation2 + $0x158] sm:$0xff]
    %v83 = vld [vmem:[#allocation2 + $0x160] sm:$0xff]
    %v84 = vld [vmem:[#allocation2 + $0x168] sm:$0xff]
    %v85 = vld [vmem:[#allocation2 + $0x170] sm:$0xff]
    %v86 = vld [vmem:[#allocation2 + $0x178] sm:$0xff]
    %v87 = vld [vmem:[%s2] sm:$0x7]
    %v89 = vlaneseq
    %v90 = vshrl.u32 %v89, 7
    %v91 = vsub.s32 0, %v90
    %v92 = vrot.slane %v87, %v91
    %v93 = vlaneseq
    %v94 = vshrl.u32 %v93, 7
    %v95 = vsub.s32 1, %v94
    %v96 = vrot.slane %v87, %v95
    %v97 = vlaneseq
    %v98 = vshrl.u32 %v97, 7
    %v99 = vsub.s32 2, %v98
    %v100 = vrot.slane %v87, %v99
    %104 = vmatprep.subr.mxu0 %v40
    %105 = vmatpush1.msra.mxu0 %v39
    %106 = vmatprep.subr.mxu0 %v43
    %107 = vmatpush1.msra.mxu0 %v42
    %108 = vmatprep.subr.mxu0 %v46
    %109 = vmatpush1.msra.mxu0 %v45
    %110 = vmatprep.subr.mxu0 %v49
    %111 = vmatpush1.msra.mxu0 %v48
    %112 = vmatprep.subr.mxu0 %v52
    %113 = vmatpush1.msra.mxu0 %v51
    %114 = vmatprep.subr.mxu0 %v55
    %115 = vmatpush1.msra.mxu0 %v54
    %116 = vmatprep.subr.mxu0 %v58
    %117 = vmatpush1.msra.mxu0 %v57
    %118 = vmatprep.subr.mxu0 %v61
    %119 = vmatpush1.msra.mxu0 %v60
    %120 = vmatprep.subr.mxu0 %v64
    %121 = vmatpush1.msra.mxu0 %v63
    %122 = vmatprep.subr.mxu0 %v67
    %123 = vmatpush1.msra.mxu0 %v66
    %124 = vmatprep.subr.mxu0 %v70
    %125 = vmatpush1.msra.mxu0 %v69
    %126 = vmatprep.subr.mxu0 %v73
    %127 = vmatpush1.msra.mxu0 %v72
    %128 = vmatprep.subr.mxu0 %v76
    %129 = vmatpush1.msra.mxu0 %v75
    %130 = vmatprep.subr.mxu0 %v79
    %131 = vmatpush1.msra.mxu0 %v78
    %132 = vmatprep.subr.mxu0 %v82
    %133 = vmatpush1.msra.mxu0 %v81
    %134 = vmatprep.subr.mxu0 %v85
    %135 = vmatpush1.msra.mxu0 %v84
    %136 = vmatprep.subr.mxu0 0.0
    %137 = vmatpush1.msra.mxu0 0.0
    %138 = vmatprep.subr.mxu0 0.0
    %139 = vmatpush1.msra.mxu0 0.0
    %140 = vmatprep.subr.mxu0 0.0
    %141 = vmatpush1.msra.mxu0 0.0
    %142 = vmatprep.subr.mxu0 0.0
    %143 = vmatpush1.msra.mxu0 0.0
    %144 = vmatprep.subr.mxu0 0.0
    %145 = vmatpush1.msra.mxu0 0.0
    %146 = vmatprep.subr.mxu0 0.0
    %147 = vmatpush1.msra.mxu0 0.0
    %148 = vmatprep.subr.mxu0 0.0
    %149 = vmatpush1.msra.mxu0 0.0
    %150 = vmatprep.subr.mxu0 0.0
    %151 = vmatpush1.msra.mxu0 0.0
    %152 = vmatprep.subr.mxu0 0.0
    %153 = vmatpush1.msra.mxu0 0.0
    %154 = vmatprep.subr.mxu0 0.0
    %155 = vmatpush1.msra.mxu0 0.0
    %156 = vmatprep.subr.mxu0 0.0
    %157 = vmatpush1.msra.mxu0 0.0
    %158 = vmatprep.subr.mxu0 0.0
    %159 = vmatpush1.msra.mxu0 0.0
    %160 = vmatprep.subr.mxu0 0.0
    %161 = vmatpush1.msra.mxu0 0.0
    %162 = vmatprep.subr.mxu0 0.0
    %163 = vmatpush1.msra.mxu0 0.0
    %164 = vmatprep.subr.mxu0 0.0
    %165 = vmatpush1.msra.mxu0 0.0
    %166 = vmatprep.subr.mxu0 0.0
    %167 = vmatpush1.msra.mxu0 0.0
    %168 = vmatprep.mubr.f32.mxu0 0.0
    %169 = vmatmul.mubr.f32.gmra.mrb[0].mxu0 %v38
    %v170 = vpop.f32.mrb[0].mxu0
    %v171 = vadd.f32 %v92, %v170
    %v172 = vpop.f32.mrb[0].mxu0
    %v173 = vadd.f32 %v96, %v172
    %174 = vdwg.mxu0
    %175 = vmatprep.subr.mxu0 0.0
    %176 = vmatpush1.msra.mxu0 %v41
    %177 = vmatprep.subr.mxu0 0.0
    %178 = vmatpush1.msra.mxu0 %v44
    %179 = vmatprep.subr.mxu0 0.0
    %180 = vmatpush1.msra.mxu0 %v47
    %181 = vmatprep.subr.mxu0 0.0
    %182 = vmatpush1.msra.mxu0 %v50
    %183 = vmatprep.subr.mxu0 0.0
    %184 = vmatpush1.msra.mxu0 %v53
    %185 = vmatprep.subr.mxu0 0.0
    %186 = vmatpush1.msra.mxu0 %v56
    %187 = vmatprep.subr.mxu0 0.0
    %188 = vmatpush1.msra.mxu0 %v59
    %189 = vmatprep.subr.mxu0 0.0
    %190 = vmatpush1.msra.mxu0 %v62
    %191 = vmatprep.subr.mxu0 0.0
    %192 = vmatpush1.msra.mxu0 %v65
    %193 = vmatprep.subr.mxu0 0.0
    %194 = vmatpush1.msra.mxu0 %v68
    %195 = vmatprep.subr.mxu0 0.0
    %196 = vmatpush1.msra.mxu0 %v71
    %197 = vmatprep.subr.mxu0 0.0
    %198 = vmatpush1.msra.mxu0 %v74
    %199 = vmatprep.subr.mxu0 0.0
    %200 = vmatpush1.msra.mxu0 %v77
    %201 = vmatprep.subr.mxu0 0.0
    %202 = vmatpush1.msra.mxu0 %v80
    %203 = vmatprep.subr.mxu0 0.0
    %204 = vmatpush1.msra.mxu0 %v83
    %205 = vmatprep.subr.mxu0 0.0
    %206 = vmatpush1.msra.mxu0 %v86
    %207 = vmatprep.subr.mxu0 0.0
    %208 = vmatpush1.msra.mxu0 0.0
    %209 = vmatprep.subr.mxu0 0.0
    %210 = vmatpush1.msra.mxu0 0.0
    %211 = vmatprep.subr.mxu0 0.0
    %212 = vmatpush1.msra.mxu0 0.0
    %213 = vmatprep.subr.mxu0 0.0
    %214 = vmatpush1.msra.mxu0 0.0
    %215 = vmatprep.subr.mxu0 0.0
    %216 = vmatpush1.msra.mxu0 0.0
    %217 = vmatprep.subr.mxu0 0.0
    %218 = vmatpush1.msra.mxu0 0.0
    %219 = vmatprep.subr.mxu0 0.0
    %220 = vmatpush1.msra.mxu0 0.0
    %221 = vmatprep.subr.mxu0 0.0
    %222 = vmatpush1.msra.mxu0 0.0
    %223 = vmatprep.subr.mxu0 0.0
    %224 = vmatpush1.msra.mxu0 0.0
    %225 = vmatprep.subr.mxu0 0.0
    %226 = vmatpush1.msra.mxu0 0.0
    %227 = vmatprep.subr.mxu0 0.0
    %228 = vmatpush1.msra.mxu0 0.0
    %229 = vmatprep.subr.mxu0 0.0
    %230 = vmatpush1.msra.mxu0 0.0
    %231 = vmatprep.subr.mxu0 0.0
    %232 = vmatpush1.msra.mxu0 0.0
    %233 = vmatprep.subr.mxu0 0.0
    %234 = vmatpush1.msra.mxu0 0.0
    %235 = vmatprep.subr.mxu0 0.0
    %236 = vmatpush1.msra.mxu0 0.0
    %237 = vmatprep.subr.mxu0 0.0
    %238 = vmatpush1.msra.mxu0 0.0
    %239 = vmatprep.mubr.f32.mxu0 0.0
    %240 = vmatmul.mubr.f32.gmra.mrb[0].mxu0 %v38
    %v241 = vpop.f32.mrb[0].mxu0
    %v242 = vadd.f32 %v100, %v241
    %v243 = vpop.f32.mrb[0].mxu0
    %244 = vdwg.mxu0
    %v245 = vld [vmem:[%s3] sm:$0xff]
    %v246 = vld [vmem:[%s3 + $0x8] sm:$0xff]
    %v247 = vld [vmem:[%s3 + $0x10] sm:$0xff]
    %v248 = vld [vmem:[%s3 + $0x18] sm:$0xff]
    %v249 = vld [vmem:[%s4] sm:$0xff]
    %v250 = vld [vmem:[%s4 + $0x8] sm:$0xff]
    %v251 = vld [vmem:[%s4 + $0x10] sm:$0xff]
    %v252 = vld [vmem:[%s4 + $0x18] sm:$0xff]
    %v253 = vld [vmem:[%s4 + $0x20] sm:$0xff]
    %v254 = vld [vmem:[%s4 + $0x28] sm:$0xff]
    %v255 = vld [vmem:[%s4 + $0x30] sm:$0xff]
    %v256 = vld [vmem:[%s4 + $0x38] sm:$0xff]
    %v257 = vld [vmem:[%s4 + $0x40] sm:$0xff]
    %v258 = vld [vmem:[%s4 + $0x48] sm:$0xff]
    %v259 = vld [vmem:[%s4 + $0x50] sm:$0xff]
    %v260 = vld [vmem:[%s4 + $0x58] sm:$0xff]
    %v261 = vld [vmem:[%s4 + $0x60] sm:$0xff]
    %v262 = vld [vmem:[%s4 + $0x68] sm:$0xff]
    %v263 = vld [vmem:[%s4 + $0x70] sm:$0xff]
    %v264 = vld [vmem:[%s4 + $0x78] sm:$0xff]
    %v265 = vld [vmem:[%s5] sm:$0xff]
    %v266 = vld [vmem:[%s5 + $0x8] sm:$0xff]
    %vm267 = vcmask 261120
    %v269 = vsel %vm267, %v173, 0
    %271 = vmatprep.subr.mxu0 0.0
    %272 = vmatpush1.msra.mxu0 %v245
    %273 = vmatprep.subr.mxu0 0.0
    %274 = vmatpush1.msra.mxu0 %v246
    %275 = vmatprep.subr.mxu0 0.0
    %276 = vmatpush1.msra.mxu0 %v247
    %277 = vmatprep.subr.mxu0 0.0
    %278 = vmatpush1.msra.mxu0 %v248
    %279 = vmatprep.subr.mxu0 0.0
    %280 = vmatpush1.msra.mxu0 0.0
    %281 = vmatprep.subr.mxu0 0.0
    %282 = vmatpush1.msra.mxu0 0.0
    %283 = vmatprep.subr.mxu0 0.0
    %284 = vmatpush1.msra.mxu0 0.0
    %285 = vmatprep.subr.mxu0 0.0
    %286 = vmatpush1.msra.mxu0 0.0
    %287 = vmatprep.subr.mxu0 0.0
    %288 = vmatpush1.msra.mxu0 0.0
    %289 = vmatprep.subr.mxu0 0.0
    %290 = vmatpush1.msra.mxu0 0.0
    %291 = vmatprep.subr.mxu0 0.0
    %292 = vmatpush1.msra.mxu0 0.0
    %293 = vmatprep.subr.mxu0 0.0
    %294 = vmatpush1.msra.mxu0 0.0
    %295 = vmatprep.subr.mxu0 0.0
    %296 = vmatpush1.msra.mxu0 0.0
    %297 = vmatprep.subr.mxu0 0.0
    %298 = vmatpush1.msra.mxu0 0.0
    %299 = vmatprep.subr.mxu0 0.0
    %300 = vmatpush1.msra.mxu0 0.0
    %301 = vmatprep.subr.mxu0 0.0
    %302 = vmatpush1.msra.mxu0 0.0
    %303 = vmatprep.subr.mxu0 0.0
    %304 = vmatpush1.msra.mxu0 0.0
    %305 = vmatprep.subr.mxu0 0.0
    %306 = vmatpush1.msra.mxu0 0.0
    %307 = vmatprep.subr.mxu0 0.0
    %308 = vmatpush1.msra.mxu0 0.0
    %309 = vmatprep.subr.mxu0 0.0
    %310 = vmatpush1.msra.mxu0 0.0
    %311 = vmatprep.subr.mxu0 0.0
    %312 = vmatpush1.msra.mxu0 0.0
    %313 = vmatprep.subr.mxu0 0.0
    %314 = vmatpush1.msra.mxu0 0.0
    %315 = vmatprep.subr.mxu0 0.0
    %316 = vmatpush1.msra.mxu0 0.0
    %317 = vmatprep.subr.mxu0 0.0
    %318 = vmatpush1.msra.mxu0 0.0
    %319 = vmatprep.subr.mxu0 0.0
    %320 = vmatpush1.msra.mxu0 0.0
    %321 = vmatprep.subr.mxu0 0.0
    %322 = vmatpush1.msra.mxu0 0.0
    %323 = vmatprep.subr.mxu0 0.0
    %324 = vmatpush1.msra.mxu0 0.0
    %325 = vmatprep.subr.mxu0 0.0
    %326 = vmatpush1.msra.mxu0 0.0
    %327 = vmatprep.subr.mxu0 0.0
    %328 = vmatpush1.msra.mxu0 0.0
    %329 = vmatprep.subr.mxu0 0.0
    %330 = vmatpush1.msra.mxu0 0.0
    %331 = vmatprep.subr.mxu0 0.0
    %332 = vmatpush1.msra.mxu0 0.0
    %333 = vmatprep.subr.mxu0 0.0
    %334 = vmatpush1.msra.mxu0 0.0
    %335 = vmatprep.mubr.f32.mxu0 0.0
    %336 = vmatmul.mubr.f32.gmra.mrb[0].mxu0 %v269
    %v337 = vpop.f32.mrb[0].mxu0
    %v338 = vadd.f32 0.0, %v337
    %v339 = vpop.f32.mrb[0].mxu0
    %340 = vdwg.mxu0
    %v341 = vmul.f32 %v171, %v338
    %342 = vmatprep.subr.mxu0 0.0
    %343 = vmatpush1.msra.mxu0 %v249
    %344 = vmatprep.subr.mxu0 0.0
    %345 = vmatpush1.msra.mxu0 %v250
    %346 = vmatprep.subr.mxu0 0.0
    %347 = vmatpush1.msra.mxu0 %v251
    %348 = vmatprep.subr.mxu0 0.0
    %349 = vmatpush1.msra.mxu0 %v252
    %350 = vmatprep.subr.mxu0 0.0
    %351 = vmatpush1.msra.mxu0 %v253
    %352 = vmatprep.subr.mxu0 0.0
    %353 = vmatpush1.msra.mxu0 %v254
    %354 = vmatprep.subr.mxu0 0.0
    %355 = vmatpush1.msra.mxu0 %v255
    %356 = vmatprep.subr.mxu0 0.0
    %357 = vmatpush1.msra.mxu0 %v256
    %358 = vmatprep.subr.mxu0 0.0
    %359 = vmatpush1.msra.mxu0 %v257
    %360 = vmatprep.subr.mxu0 0.0
    %361 = vmatpush1.msra.mxu0 %v258
    %362 = vmatprep.subr.mxu0 0.0
    %363 = vmatpush1.msra.mxu0 %v259
    %364 = vmatprep.subr.mxu0 0.0
    %365 = vmatpush1.msra.mxu0 %v260
    %366 = vmatprep.subr.mxu0 0.0
    %367 = vmatpush1.msra.mxu0 %v261
    %368 = vmatprep.subr.mxu0 0.0
    %369 = vmatpush1.msra.mxu0 %v262
    %370 = vmatprep.subr.mxu0 0.0
    %371 = vmatpush1.msra.mxu0 %v263
    %372 = vmatprep.subr.mxu0 0.0
    %373 = vmatpush1.msra.mxu0 %v264
    %374 = vmatprep.subr.mxu0 0.0
    %375 = vmatpush1.msra.mxu0 0.0
    %376 = vmatprep.subr.mxu0 0.0
    %377 = vmatpush1.msra.mxu0 0.0
    %378 = vmatprep.subr.mxu0 0.0
    %379 = vmatpush1.msra.mxu0 0.0
    %380 = vmatprep.subr.mxu0 0.0
    %381 = vmatpush1.msra.mxu0 0.0
    %382 = vmatprep.subr.mxu0 0.0
    %383 = vmatpush1.msra.mxu0 0.0
    %384 = vmatprep.subr.mxu0 0.0
    %385 = vmatpush1.msra.mxu0 0.0
    %386 = vmatprep.subr.mxu0 0.0
    %387 = vmatpush1.msra.mxu0 0.0
    %388 = vmatprep.subr.mxu0 0.0
    %389 = vmatpush1.msra.mxu0 0.0
    %390 = vmatprep.subr.mxu0 0.0
    %391 = vmatpush1.msra.mxu0 0.0
    %392 = vmatprep.subr.mxu0 0.0
    %393 = vmatpush1.msra.mxu0 0.0
    %394 = vmatprep.subr.mxu0 0.0
    %395 = vmatpush1.msra.mxu0 0.0
    %396 = vmatprep.subr.mxu0 0.0
    %397 = vmatpush1.msra.mxu0 0.0
    %398 = vmatprep.subr.mxu0 0.0
    %399 = vmatpush1.msra.mxu0 0.0
    %400 = vmatprep.subr.mxu0 0.0
    %401 = vmatpush1.msra.mxu0 0.0
    %402 = vmatprep.subr.mxu0 0.0
    %403 = vmatpush1.msra.mxu0 0.0
    %404 = vmatprep.subr.mxu0 0.0
    %405 = vmatpush1.msra.mxu0 0.0
    %406 = vmatprep.mubr.f32.mxu0 0.0
    %407 = vmatmul.mubr.f32.gmra.mrb[0].mxu0 %v341
    %v408 = vpop.f32.mrb[0].mxu0
    %v409 = vadd.f32 0.0, %v408
    %v410 = vpop.f32.mrb[0].mxu0
    %411 = vdwg.mxu0
    %412 = vrot.lane.b32.xlu0 %v173, 96
    %v413 = vpop.permute.xlu0 %412
    %v414 = vsel %vm267, %v413, 0
    %416 = vmatprep.subr.mxu0 0.0
    %417 = vmatpush1.msra.mxu0 %v245
    %418 = vmatprep.subr.mxu0 0.0
    %419 = vmatpush1.msra.mxu0 %v246
    %420 = vmatprep.subr.mxu0 0.0
    %421 = vmatpush1.msra.mxu0 %v247
    %422 = vmatprep.subr.mxu0 0.0
    %423 = vmatpush1.msra.mxu0 %v248
    %424 = vmatprep.subr.mxu0 0.0
    %425 = vmatpush1.msra.mxu0 0.0
    %426 = vmatprep.subr.mxu0 0.0
    %427 = vmatpush1.msra.mxu0 0.0
    %428 = vmatprep.subr.mxu0 0.0
    %429 = vmatpush1.msra.mxu0 0.0
    %430 = vmatprep.subr.mxu0 0.0
    %431 = vmatpush1.msra.mxu0 0.0
    %432 = vmatprep.subr.mxu0 0.0
    %433 = vmatpush1.msra.mxu0 0.0
    %434 = vmatprep.subr.mxu0 0.0
    %435 = vmatpush1.msra.mxu0 0.0
    %436 = vmatprep.subr.mxu0 0.0
    %437 = vmatpush1.msra.mxu0 0.0
    %438 = vmatprep.subr.mxu0 0.0
    %439 = vmatpush1.msra.mxu0 0.0
    %440 = vmatprep.subr.mxu0 0.0
    %441 = vmatpush1.msra.mxu0 0.0
    %442 = vmatprep.subr.mxu0 0.0
    %443 = vmatpush1.msra.mxu0 0.0
    %444 = vmatprep.subr.mxu0 0.0
    %445 = vmatpush1.msra.mxu0 0.0
    %446 = vmatprep.subr.mxu0 0.0
    %447 = vmatpush1.msra.mxu0 0.0
    %448 = vmatprep.subr.mxu0 0.0
    %449 = vmatpush1.msra.mxu0 0.0
    %450 = vmatprep.subr.mxu0 0.0
    %451 = vmatpush1.msra.mxu0 0.0
    %452 = vmatprep.subr.mxu0 0.0
    %453 = vmatpush1.msra.mxu0 0.0
    %454 = vmatprep.subr.mxu0 0.0
    %455 = vmatpush1.msra.mxu0 0.0
    %456 = vmatprep.subr.mxu0 0.0
    %457 = vmatpush1.msra.mxu0 0.0
    %458 = vmatprep.subr.mxu0 0.0
    %459 = vmatpush1.msra.mxu0 0.0
    %460 = vmatprep.subr.mxu0 0.0
    %461 = vmatpush1.msra.mxu0 0.0
    %462 = vmatprep.subr.mxu0 0.0
    %463 = vmatpush1.msra.mxu0 0.0
    %464 = vmatprep.subr.mxu0 0.0
    %465 = vmatpush1.msra.mxu0 0.0
    %466 = vmatprep.subr.mxu0 0.0
    %467 = vmatpush1.msra.mxu0 0.0
    %468 = vmatprep.subr.mxu0 0.0
    %469 = vmatpush1.msra.mxu0 0.0
    %470 = vmatprep.subr.mxu0 0.0
    %471 = vmatpush1.msra.mxu0 0.0
    %472 = vmatprep.subr.mxu0 0.0
    %473 = vmatpush1.msra.mxu0 0.0
    %474 = vmatprep.subr.mxu0 0.0
    %475 = vmatpush1.msra.mxu0 0.0
    %476 = vmatprep.subr.mxu0 0.0
    %477 = vmatpush1.msra.mxu0 0.0
    %478 = vmatprep.subr.mxu0 0.0
    %479 = vmatpush1.msra.mxu0 0.0
    %480 = vmatprep.mubr.f32.mxu0 0.0
    %481 = vmatmul.mubr.f32.gmra.mrb[0].mxu0 %v414
    %v482 = vpop.f32.mrb[0].mxu0
    %v483 = vadd.f32 0.0, %v482
    %v484 = vpop.f32.mrb[0].mxu0
    %485 = vdwg.mxu0
    %v486 = vmul.f32 %v171, %v483
    %487 = vmatprep.subr.mxu0 0.0
    %488 = vmatpush1.msra.mxu0 %v249
    %489 = vmatprep.subr.mxu0 0.0
    %490 = vmatpush1.msra.mxu0 %v250
    %491 = vmatprep.subr.mxu0 0.0
    %492 = vmatpush1.msra.mxu0 %v251
    %493 = vmatprep.subr.mxu0 0.0
    %494 = vmatpush1.msra.mxu0 %v252
    %495 = vmatprep.subr.mxu0 0.0
    %496 = vmatpush1.msra.mxu0 %v253
    %497 = vmatprep.subr.mxu0 0.0
    %498 = vmatpush1.msra.mxu0 %v254
    %499 = vmatprep.subr.mxu0 0.0
    %500 = vmatpush1.msra.mxu0 %v255
    %501 = vmatprep.subr.mxu0 0.0
    %502 = vmatpush1.msra.mxu0 %v256
    %503 = vmatprep.subr.mxu0 0.0
    %504 = vmatpush1.msra.mxu0 %v257
    %505 = vmatprep.subr.mxu0 0.0
    %506 = vmatpush1.msra.mxu0 %v258
    %507 = vmatprep.subr.mxu0 0.0
    %508 = vmatpush1.msra.mxu0 %v259
    %509 = vmatprep.subr.mxu0 0.0
    %510 = vmatpush1.msra.mxu0 %v260
    %511 = vmatprep.subr.mxu0 0.0
    %512 = vmatpush1.msra.mxu0 %v261
    %513 = vmatprep.subr.mxu0 0.0
    %514 = vmatpush1.msra.mxu0 %v262
    %515 = vmatprep.subr.mxu0 0.0
    %516 = vmatpush1.msra.mxu0 %v263
    %517 = vmatprep.subr.mxu0 0.0
    %518 = vmatpush1.msra.mxu0 %v264
    %519 = vmatprep.subr.mxu0 0.0
    %520 = vmatpush1.msra.mxu0 0.0
    %521 = vmatprep.subr.mxu0 0.0
    %522 = vmatpush1.msra.mxu0 0.0
    %523 = vmatprep.subr.mxu0 0.0
    %524 = vmatpush1.msra.mxu0 0.0
    %525 = vmatprep.subr.mxu0 0.0
    %526 = vmatpush1.msra.mxu0 0.0
    %527 = vmatprep.subr.mxu0 0.0
    %528 = vmatpush1.msra.mxu0 0.0
    %529 = vmatprep.subr.mxu0 0.0
    %530 = vmatpush1.msra.mxu0 0.0
    %531 = vmatprep.subr.mxu0 0.0
    %532 = vmatpush1.msra.mxu0 0.0
    %533 = vmatprep.subr.mxu0 0.0
    %534 = vmatpush1.msra.mxu0 0.0
    %535 = vmatprep.subr.mxu0 0.0
    %536 = vmatpush1.msra.mxu0 0.0
    %537 = vmatprep.subr.mxu0 0.0
    %538 = vmatpush1.msra.mxu0 0.0
    %539 = vmatprep.subr.mxu0 0.0
    %540 = vmatpush1.msra.mxu0 0.0
    %541 = vmatprep.subr.mxu0 0.0
    %542 = vmatpush1.msra.mxu0 0.0
    %543 = vmatprep.subr.mxu0 0.0
    %544 = vmatpush1.msra.mxu0 0.0
    %545 = vmatprep.subr.mxu0 0.0
    %546 = vmatpush1.msra.mxu0 0.0
    %547 = vmatprep.subr.mxu0 0.0
    %548 = vmatpush1.msra.mxu0 0.0
    %549 = vmatprep.subr.mxu0 0.0
    %550 = vmatpush1.msra.mxu0 0.0
    %551 = vmatprep.mubr.f32.mxu0 0.0
    %552 = vmatmul.mubr.f32.gmra.mrb[0].mxu0 %v486
    %v553 = vpop.f32.mrb[0].mxu0
    %v554 = vadd.f32 0.0, %v553
    %v555 = vpop.f32.mrb[0].mxu0
    %556 = vdwg.mxu0
    %557 = vrot.lane.b32.xlu0 %v173, 64
    %v558 = vpop.permute.xlu0 %557
    %v559 = vsel %vm267, %v558, 0
    %561 = vmatprep.subr.mxu0 0.0
    %562 = vmatpush1.msra.mxu0 %v245
    %563 = vmatprep.subr.mxu0 0.0
    %564 = vmatpush1.msra.mxu0 %v246
    %565 = vmatprep.subr.mxu0 0.0
    %566 = vmatpush1.msra.mxu0 %v247
    %567 = vmatprep.subr.mxu0 0.0
    %568 = vmatpush1.msra.mxu0 %v248
    %569 = vmatprep.subr.mxu0 0.0
    %570 = vmatpush1.msra.mxu0 0.0
    %571 = vmatprep.subr.mxu0 0.0
    %572 = vmatpush1.msra.mxu0 0.0
    %573 = vmatprep.subr.mxu0 0.0
    %574 = vmatpush1.msra.mxu0 0.0
    %575 = vmatprep.subr.mxu0 0.0
    %576 = vmatpush1.msra.mxu0 0.0
    %577 = vmatprep.subr.mxu0 0.0
    %578 = vmatpush1.msra.mxu0 0.0
    %579 = vmatprep.subr.mxu0 0.0
    %580 = vmatpush1.msra.mxu0 0.0
    %581 = vmatprep.subr.mxu0 0.0
    %582 = vmatpush1.msra.mxu0 0.0
    %583 = vmatprep.subr.mxu0 0.0
    %584 = vmatpush1.msra.mxu0 0.0
    %585 = vmatprep.subr.mxu0 0.0
    %586 = vmatpush1.msra.mxu0 0.0
    %587 = vmatprep.subr.mxu0 0.0
    %588 = vmatpush1.msra.mxu0 0.0
    %589 = vmatprep.subr.mxu0 0.0
    %590 = vmatpush1.msra.mxu0 0.0
    %591 = vmatprep.subr.mxu0 0.0
    %592 = vmatpush1.msra.mxu0 0.0
    %593 = vmatprep.subr.mxu0 0.0
    %594 = vmatpush1.msra.mxu0 0.0
    %595 = vmatprep.subr.mxu0 0.0
    %596 = vmatpush1.msra.mxu0 0.0
    %597 = vmatprep.subr.mxu0 0.0
    %598 = vmatpush1.msra.mxu0 0.0
    %599 = vmatprep.subr.mxu0 0.0
    %600 = vmatpush1.msra.mxu0 0.0
    %601 = vmatprep.subr.mxu0 0.0
    %602 = vmatpush1.msra.mxu0 0.0
    %603 = vmatprep.subr.mxu0 0.0
    %604 = vmatpush1.msra.mxu0 0.0
    %605 = vmatprep.subr.mxu0 0.0
    %606 = vmatpush1.msra.mxu0 0.0
    %607 = vmatprep.subr.mxu0 0.0
    %608 = vmatpush1.msra.mxu0 0.0
    %609 = vmatprep.subr.mxu0 0.0
    %610 = vmatpush1.msra.mxu0 0.0
    %611 = vmatprep.subr.mxu0 0.0
    %612 = vmatpush1.msra.mxu0 0.0
    %613 = vmatprep.subr.mxu0 0.0
    %614 = vmatpush1.msra.mxu0 0.0
    %615 = vmatprep.subr.mxu0 0.0
    %616 = vmatpush1.msra.mxu0 0.0
    %617 = vmatprep.subr.mxu0 0.0
    %618 = vmatpush1.msra.mxu0 0.0
    %619 = vmatprep.subr.mxu0 0.0
    %620 = vmatpush1.msra.mxu0 0.0
    %621 = vmatprep.subr.mxu0 0.0
    %622 = vmatpush1.msra.mxu0 0.0
    %623 = vmatprep.subr.mxu0 0.0
    %624 = vmatpush1.msra.mxu0 0.0
    %625 = vmatprep.mubr.f32.mxu0 0.0
    %626 = vmatmul.mubr.f32.gmra.mrb[0].mxu0 %v559
    %v627 = vpop.f32.mrb[0].mxu0
    %v628 = vadd.f32 0.0, %v627
    %v629 = vpop.f32.mrb[0].mxu0
    %630 = vdwg.mxu0
    %v631 = vmul.f32 %v171, %v628
    %632 = vmatprep.subr.mxu0 0.0
    %633 = vmatpush1.msra.mxu0 %v249
    %634 = vmatprep.subr.mxu0 0.0
    %635 = vmatpush1.msra.mxu0 %v250
    %636 = vmatprep.subr.mxu0 0.0
    %637 = vmatpush1.msra.mxu0 %v251
    %638 = vmatprep.subr.mxu0 0.0
    %639 = vmatpush1.msra.mxu0 %v252
    %640 = vmatprep.subr.mxu0 0.0
    %641 = vmatpush1.msra.mxu0 %v253
    %642 = vmatprep.subr.mxu0 0.0
    %643 = vmatpush1.msra.mxu0 %v254
    %644 = vmatprep.subr.mxu0 0.0
    %645 = vmatpush1.msra.mxu0 %v255
    %646 = vmatprep.subr.mxu0 0.0
    %647 = vmatpush1.msra.mxu0 %v256
    %648 = vmatprep.subr.mxu0 0.0
    %649 = vmatpush1.msra.mxu0 %v257
    %650 = vmatprep.subr.mxu0 0.0
    %651 = vmatpush1.msra.mxu0 %v258
    %652 = vmatprep.subr.mxu0 0.0
    %653 = vmatpush1.msra.mxu0 %v259
    %654 = vmatprep.subr.mxu0 0.0
    %655 = vmatpush1.msra.mxu0 %v260
    %656 = vmatprep.subr.mxu0 0.0
    %657 = vmatpush1.msra.mxu0 %v261
    %658 = vmatprep.subr.mxu0 0.0
    %659 = vmatpush1.msra.mxu0 %v262
    %660 = vmatprep.subr.mxu0 0.0
    %661 = vmatpush1.msra.mxu0 %v263
    %662 = vmatprep.subr.mxu0 0.0
    %663 = vmatpush1.msra.mxu0 %v264
    %664 = vmatprep.subr.mxu0 0.0
    %665 = vmatpush1.msra.mxu0 0.0
    %666 = vmatprep.subr.mxu0 0.0
    %667 = vmatpush1.msra.mxu0 0.0
    %668 = vmatprep.subr.mxu0 0.0
    %669 = vmatpush1.msra.mxu0 0.0
    %670 = vmatprep.subr.mxu0 0.0
    %671 = vmatpush1.msra.mxu0 0.0
    %672 = vmatprep.subr.mxu0 0.0
    %673 = vmatpush1.msra.mxu0 0.0
    %674 = vmatprep.subr.mxu0 0.0
    %675 = vmatpush1.msra.mxu0 0.0
    %676 = vmatprep.subr.mxu0 0.0
    %677 = vmatpush1.msra.mxu0 0.0
    %678 = vmatprep.subr.mxu0 0.0
    %679 = vmatpush1.msra.mxu0 0.0
    %680 = vmatprep.subr.mxu0 0.0
    %681 = vmatpush1.msra.mxu0 0.0
    %682 = vmatprep.subr.mxu0 0.0
    %683 = vmatpush1.msra.mxu0 0.0
    %684 = vmatprep.subr.mxu0 0.0
    %685 = vmatpush1.msra.mxu0 0.0
    %686 = vmatprep.subr.mxu0 0.0
    %687 = vmatpush1.msra.mxu0 0.0
    %688 = vmatprep.subr.mxu0 0.0
    %689 = vmatpush1.msra.mxu0 0.0
    %690 = vmatprep.subr.mxu0 0.0
    %691 = vmatpush1.msra.mxu0 0.0
    %692 = vmatprep.subr.mxu0 0.0
    %693 = vmatpush1.msra.mxu0 0.0
    %694 = vmatprep.subr.mxu0 0.0
    %695 = vmatpush1.msra.mxu0 0.0
    %696 = vmatprep.mubr.f32.mxu0 0.0
    %697 = vmatmul.mubr.f32.gmra.mrb[0].mxu0 %v631
    %v698 = vpop.f32.mrb[0].mxu0
    %v699 = vadd.f32 0.0, %v698
    %v700 = vpop.f32.mrb[0].mxu0
    %701 = vdwg.mxu0
    %702 = vrot.lane.b32.xlu0 %v173, 32
    %v703 = vpop.permute.xlu0 %702
    %v704 = vsel %vm267, %v703, 0
    %706 = vmatprep.subr.mxu0 0.0
    %707 = vmatpush1.msra.mxu0 %v245
    %708 = vmatprep.subr.mxu0 0.0
    %709 = vmatpush1.msra.mxu0 %v246
    %710 = vmatprep.subr.mxu0 0.0
    %711 = vmatpush1.msra.mxu0 %v247
    %712 = vmatprep.subr.mxu0 0.0
    %713 = vmatpush1.msra.mxu0 %v248
    %714 = vmatprep.subr.mxu0 0.0
    %715 = vmatpush1.msra.mxu0 0.0
    %716 = vmatprep.subr.mxu0 0.0
    %717 = vmatpush1.msra.mxu0 0.0
    %718 = vmatprep.subr.mxu0 0.0
    %719 = vmatpush1.msra.mxu0 0.0
    %720 = vmatprep.subr.mxu0 0.0
    %721 = vmatpush1.msra.mxu0 0.0
    %722 = vmatprep.subr.mxu0 0.0
    %723 = vmatpush1.msra.mxu0 0.0
    %724 = vmatprep.subr.mxu0 0.0
    %725 = vmatpush1.msra.mxu0 0.0
    %726 = vmatprep.subr.mxu0 0.0
    %727 = vmatpush1.msra.mxu0 0.0
    %728 = vmatprep.subr.mxu0 0.0
    %729 = vmatpush1.msra.mxu0 0.0
    %730 = vmatprep.subr.mxu0 0.0
    %731 = vmatpush1.msra.mxu0 0.0
    %732 = vmatprep.subr.mxu0 0.0
    %733 = vmatpush1.msra.mxu0 0.0
    %734 = vmatprep.subr.mxu0 0.0
    %735 = vmatpush1.msra.mxu0 0.0
    %736 = vmatprep.subr.mxu0 0.0
    %737 = vmatpush1.msra.mxu0 0.0
    %738 = vmatprep.subr.mxu0 0.0
    %739 = vmatpush1.msra.mxu0 0.0
    %740 = vmatprep.subr.mxu0 0.0
    %741 = vmatpush1.msra.mxu0 0.0
    %742 = vmatprep.subr.mxu0 0.0
    %743 = vmatpush1.msra.mxu0 0.0
    %744 = vmatprep.subr.mxu0 0.0
    %745 = vmatpush1.msra.mxu0 0.0
    %746 = vmatprep.subr.mxu0 0.0
    %747 = vmatpush1.msra.mxu0 0.0
    %748 = vmatprep.subr.mxu0 0.0
    %749 = vmatpush1.msra.mxu0 0.0
    %750 = vmatprep.subr.mxu0 0.0
    %751 = vmatpush1.msra.mxu0 0.0
    %752 = vmatprep.subr.mxu0 0.0
    %753 = vmatpush1.msra.mxu0 0.0
    %754 = vmatprep.subr.mxu0 0.0
    %755 = vmatpush1.msra.mxu0 0.0
    %756 = vmatprep.subr.mxu0 0.0
    %757 = vmatpush1.msra.mxu0 0.0
    %758 = vmatprep.subr.mxu0 0.0
    %759 = vmatpush1.msra.mxu0 0.0
    %760 = vmatprep.subr.mxu0 0.0
    %761 = vmatpush1.msra.mxu0 0.0
    %762 = vmatprep.subr.mxu0 0.0
    %763 = vmatpush1.msra.mxu0 0.0
    %764 = vmatprep.subr.mxu0 0.0
    %765 = vmatpush1.msra.mxu0 0.0
    %766 = vmatprep.subr.mxu0 0.0
    %767 = vmatpush1.msra.mxu0 0.0
    %768 = vmatprep.subr.mxu0 0.0
    %769 = vmatpush1.msra.mxu0 0.0
    %770 = vmatprep.mubr.f32.mxu0 0.0
    %771 = vmatmul.mubr.f32.gmra.mrb[0].mxu0 %v704
    %v772 = vpop.f32.mrb[0].mxu0
    %v773 = vadd.f32 0.0, %v772
    %v774 = vpop.f32.mrb[0].mxu0
    %775 = vdwg.mxu0
    %v776 = vmul.f32 %v171, %v773
    %777 = vmatprep.subr.mxu0 0.0
    %778 = vmatpush1.msra.mxu0 %v249
    %779 = vmatprep.subr.mxu0 0.0
    %780 = vmatpush1.msra.mxu0 %v250
    %781 = vmatprep.subr.mxu0 0.0
    %782 = vmatpush1.msra.mxu0 %v251
    %783 = vmatprep.subr.mxu0 0.0
    %784 = vmatpush1.msra.mxu0 %v252
    %785 = vmatprep.subr.mxu0 0.0
    %786 = vmatpush1.msra.mxu0 %v253
    %787 = vmatprep.subr.mxu0 0.0
    %788 = vmatpush1.msra.mxu0 %v254
    %789 = vmatprep.subr.mxu0 0.0
    %790 = vmatpush1.msra.mxu0 %v255
    %791 = vmatprep.subr.mxu0 0.0
    %792 = vmatpush1.msra.mxu0 %v256
    %793 = vmatprep.subr.mxu0 0.0
    %794 = vmatpush1.msra.mxu0 %v257
    %795 = vmatprep.subr.mxu0 0.0
    %796 = vmatpush1.msra.mxu0 %v258
    %797 = vmatprep.subr.mxu0 0.0
    %798 = vmatpush1.msra.mxu0 %v259
    %799 = vmatprep.subr.mxu0 0.0
    %800 = vmatpush1.msra.mxu0 %v260
    %801 = vmatprep.subr.mxu0 0.0
    %802 = vmatpush1.msra.mxu0 %v261
    %803 = vmatprep.subr.mxu0 0.0
    %804 = vmatpush1.msra.mxu0 %v262
    %805 = vmatprep.subr.mxu0 0.0
    %806 = vmatpush1.msra.mxu0 %v263
    %807 = vmatprep.subr.mxu0 0.0
    %808 = vmatpush1.msra.mxu0 %v264
    %809 = vmatprep.subr.mxu0 0.0
    %810 = vmatpush1.msra.mxu0 0.0
    %811 = vmatprep.subr.mxu0 0.0
    %812 = vmatpush1.msra.mxu0 0.0
    %813 = vmatprep.subr.mxu0 0.0
    %814 = vmatpush1.msra.mxu0 0.0
    %815 = vmatprep.subr.mxu0 0.0
    %816 = vmatpush1.msra.mxu0 0.0
    %817 = vmatprep.subr.mxu0 0.0
    %818 = vmatpush1.msra.mxu0 0.0
    %819 = vmatprep.subr.mxu0 0.0
    %820 = vmatpush1.msra.mxu0 0.0
    %821 = vmatprep.subr.mxu0 0.0
    %822 = vmatpush1.msra.mxu0 0.0
    %823 = vmatprep.subr.mxu0 0.0
    %824 = vmatpush1.msra.mxu0 0.0
    %825 = vmatprep.subr.mxu0 0.0
    %826 = vmatpush1.msra.mxu0 0.0
    %827 = vmatprep.subr.mxu0 0.0
    %828 = vmatpush1.msra.mxu0 0.0
    %829 = vmatprep.subr.mxu0 0.0
    %830 = vmatpush1.msra.mxu0 0.0
    %831 = vmatprep.subr.mxu0 0.0
    %832 = vmatpush1.msra.mxu0 0.0
    %833 = vmatprep.subr.mxu0 0.0
    %834 = vmatpush1.msra.mxu0 0.0
    %835 = vmatprep.subr.mxu0 0.0
    %836 = vmatpush1.msra.mxu0 0.0
    %837 = vmatprep.subr.mxu0 0.0
    %838 = vmatpush1.msra.mxu0 0.0
    %839 = vmatprep.subr.mxu0 0.0
    %840 = vmatpush1.msra.mxu0 0.0
    %841 = vmatprep.mubr.f32.mxu0 0.0
    %842 = vmatmul.mubr.f32.gmra.mrb[0].mxu0 %v776
    %v843 = vpop.f32.mrb[0].mxu0
    %v844 = vadd.f32 0.0, %v843
    %v845 = vpop.f32.mrb[0].mxu0
    %846 = vdwg.mxu0
    %v847 = vmax.f32 %v409, %v554
    %v848 = vmax.f32 %v847, %v699
    %v849 = vmax.f32 %v848, %v844
    %v850 = vsub.f32 %v409, %v849
    %v851 = vmul.f32 %v850, 1.442695
    %v852 = vpow.pop %v851
    %v853 = vsub.f32 %v554, %v849
    %v854 = vmul.f32 %v853, 1.442695
    %v855 = vpow.pop %v854
    %v856 = vsub.f32 %v699, %v849
    %v857 = vmul.f32 %v856, 1.442695
    %v858 = vpow.pop %v857
    %v859 = vsub.f32 %v844, %v849
    %v860 = vmul.f32 %v859, 1.442695
    %v861 = vpow.pop %v860
    %v862 = vadd.f32 %v852, %v855
    %v863 = vadd.f32 %v862, %v858
    %v864 = vadd.f32 %v863, %v861
    %v865 = vrcp.pop %v864
    %v866 = vmul.f32 1.0, %v865
    %v867 = vmul.f32 %v852, %v866
    %v868 = vmul.f32 %v855, %v866
    %v869 = vmul.f32 %v858, %v866
    %v870 = vmul.f32 %v861, %v866
    %v872 = vsel %vm267, %v242, 0
    %874 = vmatprep.subr.mxu0 0.0
    %875 = vmatpush1.msra.mxu0 %v245
    %876 = vmatprep.subr.mxu0 0.0
    %877 = vmatpush1.msra.mxu0 %v246
    %878 = vmatprep.subr.mxu0 0.0
    %879 = vmatpush1.msra.mxu0 %v247
    %880 = vmatprep.subr.mxu0 0.0
    %881 = vmatpush1.msra.mxu0 %v248
    %882 = vmatprep.subr.mxu0 0.0
    %883 = vmatpush1.msra.mxu0 0.0
    %884 = vmatprep.subr.mxu0 0.0
    %885 = vmatpush1.msra.mxu0 0.0
    %886 = vmatprep.subr.mxu0 0.0
    %887 = vmatpush1.msra.mxu0 0.0
    %888 = vmatprep.subr.mxu0 0.0
    %889 = vmatpush1.msra.mxu0 0.0
    %890 = vmatprep.subr.mxu0 0.0
    %891 = vmatpush1.msra.mxu0 0.0
    %892 = vmatprep.subr.mxu0 0.0
    %893 = vmatpush1.msra.mxu0 0.0
    %894 = vmatprep.subr.mxu0 0.0
    %895 = vmatpush1.msra.mxu0 0.0
    %896 = vmatprep.subr.mxu0 0.0
    %897 = vmatpush1.msra.mxu0 0.0
    %898 = vmatprep.subr.mxu0 0.0
    %899 = vmatpush1.msra.mxu0 0.0
    %900 = vmatprep.subr.mxu0 0.0
    %901 = vmatpush1.msra.mxu0 0.0
    %902 = vmatprep.subr.mxu0 0.0
    %903 = vmatpush1.msra.mxu0 0.0
    %904 = vmatprep.subr.mxu0 0.0
    %905 = vmatpush1.msra.mxu0 0.0
    %906 = vmatprep.subr.mxu0 0.0
    %907 = vmatpush1.msra.mxu0 0.0
    %908 = vmatprep.subr.mxu0 0.0
    %909 = vmatpush1.msra.mxu0 0.0
    %910 = vmatprep.subr.mxu0 0.0
    %911 = vmatpush1.msra.mxu0 0.0
    %912 = vmatprep.subr.mxu0 0.0
    %913 = vmatpush1.msra.mxu0 0.0
    %914 = vmatprep.subr.mxu0 0.0
    %915 = vmatpush1.msra.mxu0 0.0
    %916 = vmatprep.subr.mxu0 0.0
    %917 = vmatpush1.msra.mxu0 0.0
    %918 = vmatprep.subr.mxu0 0.0
    %919 = vmatpush1.msra.mxu0 0.0
    %920 = vmatprep.subr.mxu0 0.0
    %921 = vmatpush1.msra.mxu0 0.0
    %922 = vmatprep.subr.mxu0 0.0
    %923 = vmatpush1.msra.mxu0 0.0
    %924 = vmatprep.subr.mxu0 0.0
    %925 = vmatpush1.msra.mxu0 0.0
    %926 = vmatprep.subr.mxu0 0.0
    %927 = vmatpush1.msra.mxu0 0.0
    %928 = vmatprep.subr.mxu0 0.0
    %929 = vmatpush1.msra.mxu0 0.0
    %930 = vmatprep.subr.mxu0 0.0
    %931 = vmatpush1.msra.mxu0 0.0
    %932 = vmatprep.subr.mxu0 0.0
    %933 = vmatpush1.msra.mxu0 0.0
    %934 = vmatprep.subr.mxu0 0.0
    %935 = vmatpush1.msra.mxu0 0.0
    %936 = vmatprep.subr.mxu0 0.0
    %937 = vmatpush1.msra.mxu0 0.0
    %938 = vmatprep.mubr.f32.mxu0 0.0
    %939 = vmatmul.mubr.f32.gmra.mrb[0].mxu0 %v872
    %v940 = vpop.f32.mrb[0].mxu0
    %v941 = vadd.f32 0.0, %v940
    %v942 = vpop.f32.mrb[0].mxu0
    %943 = vdwg.mxu0
    %vm944 = vcmask 130048
    %v946 = vsel %vm944, %v867, 0
    %948 = vmatprep.subr.mxu0 0.0
    %949 = vmatpush1.msra.mxu0 %v265
    %950 = vmatprep.subr.mxu0 0.0
    %951 = vmatpush1.msra.mxu0 %v266
    %952 = vmatprep.subr.mxu0 0.0
    %953 = vmatpush1.msra.mxu0 0.0
    %954 = vmatprep.subr.mxu0 0.0
    %955 = vmatpush1.msra.mxu0 0.0
    %956 = vmatprep.subr.mxu0 0.0
    %957 = vmatpush1.msra.mxu0 0.0
    %958 = vmatprep.subr.mxu0 0.0
    %959 = vmatpush1.msra.mxu0 0.0
    %960 = vmatprep.subr.mxu0 0.0
    %961 = vmatpush1.msra.mxu0 0.0
    %962 = vmatprep.subr.mxu0 0.0
    %963 = vmatpush1.msra.mxu0 0.0
    %964 = vmatprep.subr.mxu0 0.0
    %965 = vmatpush1.msra.mxu0 0.0
    %966 = vmatprep.subr.mxu0 0.0
    %967 = vmatpush1.msra.mxu0 0.0
    %968 = vmatprep.subr.mxu0 0.0
    %969 = vmatpush1.msra.mxu0 0.0
    %970 = vmatprep.subr.mxu0 0.0
    %971 = vmatpush1.msra.mxu0 0.0
    %972 = vmatprep.subr.mxu0 0.0
    %973 = vmatpush1.msra.mxu0 0.0
    %974 = vmatprep.subr.mxu0 0.0
    %975 = vmatpush1.msra.mxu0 0.0
    %976 = vmatprep.subr.mxu0 0.0
    %977 = vmatpush1.msra.mxu0 0.0
    %978 = vmatprep.subr.mxu0 0.0
    %979 = vmatpush1.msra.mxu0 0.0
    %980 = vmatprep.subr.mxu0 0.0
    %981 = vmatpush1.msra.mxu0 0.0
    %982 = vmatprep.subr.mxu0 0.0
    %983 = vmatpush1.msra.mxu0 0.0
    %984 = vmatprep.subr.mxu0 0.0
    %985 = vmatpush1.msra.mxu0 0.0
    %986 = vmatprep.subr.mxu0 0.0
    %987 = vmatpush1.msra.mxu0 0.0
    %988 = vmatprep.subr.mxu0 0.0
    %989 = vmatpush1.msra.mxu0 0.0
    %990 = vmatprep.subr.mxu0 0.0
    %991 = vmatpush1.msra.mxu0 0.0
    %992 = vmatprep.subr.mxu0 0.0
    %993 = vmatpush1.msra.mxu0 0.0
    %994 = vmatprep.subr.mxu0 0.0
    %995 = vmatpush1.msra.mxu0 0.0
    %996 = vmatprep.subr.mxu0 0.0
    %997 = vmatpush1.msra.mxu0 0.0
    %998 = vmatprep.subr.mxu0 0.0
    %999 = vmatpush1.msra.mxu0 0.0
    %1000 = vmatprep.subr.mxu0 0.0
    %1001 = vmatpush1.msra.mxu0 0.0
    %1002 = vmatprep.subr.mxu0 0.0
    %1003 = vmatpush1.msra.mxu0 0.0
    %1004 = vmatprep.subr.mxu0 0.0
    %1005 = vmatpush1.msra.mxu0 0.0
    %1006 = vmatprep.subr.mxu0 0.0
    %1007 = vmatpush1.msra.mxu0 0.0
    %1008 = vmatprep.subr.mxu0 0.0
    %1009 = vmatpush1.msra.mxu0 0.0
    %1010 = vmatprep.subr.mxu0 0.0
    %1011 = vmatpush1.msra.mxu0 0.0
    %1012 = vmatprep.mubr.f32.mxu0 0.0
    %1013 = vmatmul.mubr.f32.gmra.mrb[0].mxu0 %v946
    %v1014 = vpop.f32.mrb[0].mxu0
    %v1015 = vadd.f32 0.0, %v1014
    %v1016 = vpop.f32.mrb[0].mxu0
    %1017 = vdwg.mxu0
    %v1018 = vmul.f32 %v1015, %v941
    %1019 = vrot.lane.b32.xlu0 %v242, 96
    %v1020 = vpop.permute.xlu0 %1019
    %v1021 = vsel %vm267, %v1020, 0
    %1023 = vmatprep.subr.mxu0 0.0
    %1024 = vmatpush1.msra.mxu0 %v245
    %1025 = vmatprep.subr.mxu0 0.0
    %1026 = vmatpush1.msra.mxu0 %v246
    %1027 = vmatprep.subr.mxu0 0.0
    %1028 = vmatpush1.msra.mxu0 %v247
    %1029 = vmatprep.subr.mxu0 0.0
    %1030 = vmatpush1.msra.mxu0 %v248
    %1031 = vmatprep.subr.mxu0 0.0
    %1032 = vmatpush1.msra.mxu0 0.0
    %1033 = vmatprep.subr.mxu0 0.0
    %1034 = vmatpush1.msra.mxu0 0.0
    %1035 = vmatprep.subr.mxu0 0.0
    %1036 = vmatpush1.msra.mxu0 0.0
    %1037 = vmatprep.subr.mxu0 0.0
    %1038 = vmatpush1.msra.mxu0 0.0
    %1039 = vmatprep.subr.mxu0 0.0
    %1040 = vmatpush1.msra.mxu0 0.0
    %1041 = vmatprep.subr.mxu0 0.0
    %1042 = vmatpush1.msra.mxu0 0.0
    %1043 = vmatprep.subr.mxu0 0.0
    %1044 = vmatpush1.msra.mxu0 0.0
    %1045 = vmatprep.subr.mxu0 0.0
    %1046 = vmatpush1.msra.mxu0 0.0
    %1047 = vmatprep.subr.mxu0 0.0
    %1048 = vmatpush1.msra.mxu0 0.0
    %1049 = vmatprep.subr.mxu0 0.0
    %1050 = vmatpush1.msra.mxu0 0.0
    %1051 = vmatprep.subr.mxu0 0.0
    %1052 = vmatpush1.msra.mxu0 0.0
    %1053 = vmatprep.subr.mxu0 0.0
    %1054 = vmatpush1.msra.mxu0 0.0
    %1055 = vmatprep.subr.mxu0 0.0
    %1056 = vmatpush1.msra.mxu0 0.0
    %1057 = vmatprep.subr.mxu0 0.0
    %1058 = vmatpush1.msra.mxu0 0.0
    %1059 = vmatprep.subr.mxu0 0.0
    %1060 = vmatpush1.msra.mxu0 0.0
    %1061 = vmatprep.subr.mxu0 0.0
    %1062 = vmatpush1.msra.mxu0 0.0
    %1063 = vmatprep.subr.mxu0 0.0
    %1064 = vmatpush1.msra.mxu0 0.0
    %1065 = vmatprep.subr.mxu0 0.0
    %1066 = vmatpush1.msra.mxu0 0.0
    %1067 = vmatprep.subr.mxu0 0.0
    %1068 = vmatpush1.msra.mxu0 0.0
    %1069 = vmatprep.subr.mxu0 0.0
    %1070 = vmatpush1.msra.mxu0 0.0
    %1071 = vmatprep.subr.mxu0 0.0
    %1072 = vmatpush1.msra.mxu0 0.0
    %1073 = vmatprep.subr.mxu0 0.0
    %1074 = vmatpush1.msra.mxu0 0.0
    %1075 = vmatprep.subr.mxu0 0.0
    %1076 = vmatpush1.msra.mxu0 0.0
    %1077 = vmatprep.subr.mxu0 0.0
    %1078 = vmatpush1.msra.mxu0 0.0
    %1079 = vmatprep.subr.mxu0 0.0
    %1080 = vmatpush1.msra.mxu0 0.0
    %1081 = vmatprep.subr.mxu0 0.0
    %1082 = vmatpush1.msra.mxu0 0.0
    %1083 = vmatprep.subr.mxu0 0.0
    %1084 = vmatpush1.msra.mxu0 0.0
    %1085 = vmatprep.subr.mxu0 0.0
    %1086 = vmatpush1.msra.mxu0 0.0
    %1087 = vmatprep.mubr.f32.mxu0 0.0
    %1088 = vmatmul.mubr.f32.gmra.mrb[0].mxu0 %v1021
    %v1089 = vpop.f32.mrb[0].mxu0
    %v1090 = vadd.f32 0.0, %v1089
    %v1091 = vpop.f32.mrb[0].mxu0
    %1092 = vdwg.mxu0
    %v1094 = vsel %vm944, %v868, 0
    %1096 = vmatprep.subr.mxu0 0.0
    %1097 = vmatpush1.msra.mxu0 %v265
    %1098 = vmatprep.subr.mxu0 0.0
    %1099 = vmatpush1.msra.mxu0 %v266
    %1100 = vmatprep.subr.mxu0 0.0
    %1101 = vmatpush1.msra.mxu0 0.0
    %1102 = vmatprep.subr.mxu0 0.0
    %1103 = vmatpush1.msra.mxu0 0.0
    %1104 = vmatprep.subr.mxu0 0.0
    %1105 = vmatpush1.msra.mxu0 0.0
    %1106 = vmatprep.subr.mxu0 0.0
    %1107 = vmatpush1.msra.mxu0 0.0
    %1108 = vmatprep.subr.mxu0 0.0
    %1109 = vmatpush1.msra.mxu0 0.0
    %1110 = vmatprep.subr.mxu0 0.0
    %1111 = vmatpush1.msra.mxu0 0.0
    %1112 = vmatprep.subr.mxu0 0.0
    %1113 = vmatpush1.msra.mxu0 0.0
    %1114 = vmatprep.subr.mxu0 0.0
    %1115 = vmatpush1.msra.mxu0 0.0
    %1116 = vmatprep.subr.mxu0 0.0
    %1117 = vmatpush1.msra.mxu0 0.0
    %1118 = vmatprep.subr.mxu0 0.0
    %1119 = vmatpush1.msra.mxu0 0.0
    %1120 = vmatprep.subr.mxu0 0.0
    %1121 = vmatpush1.msra.mxu0 0.0
    %1122 = vmatprep.subr.mxu0 0.0
    %1123 = vmatpush1.msra.mxu0 0.0
    %1124 = vmatprep.subr.mxu0 0.0
    %1125 = vmatpush1.msra.mxu0 0.0
    %1126 = vmatprep.subr.mxu0 0.0
    %1127 = vmatpush1.msra.mxu0 0.0
    %1128 = vmatprep.subr.mxu0 0.0
    %1129 = vmatpush1.msra.mxu0 0.0
    %1130 = vmatprep.subr.mxu0 0.0
    %1131 = vmatpush1.msra.mxu0 0.0
    %1132 = vmatprep.subr.mxu0 0.0
    %1133 = vmatpush1.msra.mxu0 0.0
    %1134 = vmatprep.subr.mxu0 0.0
    %1135 = vmatpush1.msra.mxu0 0.0
    %1136 = vmatprep.subr.mxu0 0.0
    %1137 = vmatpush1.msra.mxu0 0.0
    %1138 = vmatprep.subr.mxu0 0.0
    %1139 = vmatpush1.msra.mxu0 0.0
    %1140 = vmatprep.subr.mxu0 0.0
    %1141 = vmatpush1.msra.mxu0 0.0
    %1142 = vmatprep.subr.mxu0 0.0
    %1143 = vmatpush1.msra.mxu0 0.0
    %1144 = vmatprep.subr.mxu0 0.0
    %1145 = vmatpush1.msra.mxu0 0.0
    %1146 = vmatprep.subr.mxu0 0.0
    %1147 = vmatpush1.msra.mxu0 0.0
    %1148 = vmatprep.subr.mxu0 0.0
    %1149 = vmatpush1.msra.mxu0 0.0
    %1150 = vmatprep.subr.mxu0 0.0
    %1151 = vmatpush1.msra.mxu0 0.0
    %1152 = vmatprep.subr.mxu0 0.0
    %1153 = vmatpush1.msra.mxu0 0.0
    %1154 = vmatprep.subr.mxu0 0.0
    %1155 = vmatpush1.msra.mxu0 0.0
    %1156 = vmatprep.subr.mxu0 0.0
    %1157 = vmatpush1.msra.mxu0 0.0
    %1158 = vmatprep.subr.mxu0 0.0
    %1159 = vmatpush1.msra.mxu0 0.0
    %1160 = vmatprep.mubr.f32.mxu0 0.0
    %1161 = vmatmul.mubr.f32.gmra.mrb[0].mxu0 %v1094
    %v1162 = vpop.f32.mrb[0].mxu0
    %v1163 = vadd.f32 0.0, %v1162
    %v1164 = vpop.f32.mrb[0].mxu0
    %1165 = vdwg.mxu0
    %v1166 = vmul.f32 %v1163, %v1090
    %v1167 = vadd.f32 %v1018, %v1166
    %1168 = vrot.lane.b32.xlu0 %v242, 64
    %v1169 = vpop.permute.xlu0 %1168
    %v1170 = vsel %vm267, %v1169, 0
    %1172 = vmatprep.subr.mxu0 0.0
    %1173 = vmatpush1.msra.mxu0 %v245
    %1174 = vmatprep.subr.mxu0 0.0
    %1175 = vmatpush1.msra.mxu0 %v246
    %1176 = vmatprep.subr.mxu0 0.0
    %1177 = vmatpush1.msra.mxu0 %v247
    %1178 = vmatprep.subr.mxu0 0.0
    %1179 = vmatpush1.msra.mxu0 %v248
    %1180 = vmatprep.subr.mxu0 0.0
    %1181 = vmatpush1.msra.mxu0 0.0
    %1182 = vmatprep.subr.mxu0 0.0
    %1183 = vmatpush1.msra.mxu0 0.0
    %1184 = vmatprep.subr.mxu0 0.0
    %1185 = vmatpush1.msra.mxu0 0.0
    %1186 = vmatprep.subr.mxu0 0.0
    %1187 = vmatpush1.msra.mxu0 0.0
    %1188 = vmatprep.subr.mxu0 0.0
    %1189 = vmatpush1.msra.mxu0 0.0
    %1190 = vmatprep.subr.mxu0 0.0
    %1191 = vmatpush1.msra.mxu0 0.0
    %1192 = vmatprep.subr.mxu0 0.0
    %1193 = vmatpush1.msra.mxu0 0.0
    %1194 = vmatprep.subr.mxu0 0.0
    %1195 = vmatpush1.msra.mxu0 0.0
    %1196 = vmatprep.subr.mxu0 0.0
    %1197 = vmatpush1.msra.mxu0 0.0
    %1198 = vmatprep.subr.mxu0 0.0
    %1199 = vmatpush1.msra.mxu0 0.0
    %1200 = vmatprep.subr.mxu0 0.0
    %1201 = vmatpush1.msra.mxu0 0.0
    %1202 = vmatprep.subr.mxu0 0.0
    %1203 = vmatpush1.msra.mxu0 0.0
    %1204 = vmatprep.subr.mxu0 0.0
    %1205 = vmatpush1.msra.mxu0 0.0
    %1206 = vmatprep.subr.mxu0 0.0
    %1207 = vmatpush1.msra.mxu0 0.0
    %1208 = vmatprep.subr.mxu0 0.0
    %1209 = vmatpush1.msra.mxu0 0.0
    %1210 = vmatprep.subr.mxu0 0.0
    %1211 = vmatpush1.msra.mxu0 0.0
    %1212 = vmatprep.subr.mxu0 0.0
    %1213 = vmatpush1.msra.mxu0 0.0
    %1214 = vmatprep.subr.mxu0 0.0
    %1215 = vmatpush1.msra.mxu0 0.0
    %1216 = vmatprep.subr.mxu0 0.0
    %1217 = vmatpush1.msra.mxu0 0.0
    %1218 = vmatprep.subr.mxu0 0.0
    %1219 = vmatpush1.msra.mxu0 0.0
    %1220 = vmatprep.subr.mxu0 0.0
    %1221 = vmatpush1.msra.mxu0 0.0
    %1222 = vmatprep.subr.mxu0 0.0
    %1223 = vmatpush1.msra.mxu0 0.0
    %1224 = vmatprep.subr.mxu0 0.0
    %1225 = vmatpush1.msra.mxu0 0.0
    %1226 = vmatprep.subr.mxu0 0.0
    %1227 = vmatpush1.msra.mxu0 0.0
    %1228 = vmatprep.subr.mxu0 0.0
    %1229 = vmatpush1.msra.mxu0 0.0
    %1230 = vmatprep.subr.mxu0 0.0
    %1231 = vmatpush1.msra.mxu0 0.0
    %1232 = vmatprep.subr.mxu0 0.0
    %1233 = vmatpush1.msra.mxu0 0.0
    %1234 = vmatprep.subr.mxu0 0.0
    %1235 = vmatpush1.msra.mxu0 0.0
    %1236 = vmatprep.mubr.f32.mxu0 0.0
    %1237 = vmatmul.mubr.f32.gmra.mrb[0].mxu0 %v1170
    %v1238 = vpop.f32.mrb[0].mxu0
    %v1239 = vadd.f32 0.0, %v1238
    %v1240 = vpop.f32.mrb[0].mxu0
    %1241 = vdwg.mxu0
    %v1243 = vsel %vm944, %v869, 0
    %1245 = vmatprep.subr.mxu0 0.0
    %1246 = vmatpush1.msra.mxu0 %v265
    %1247 = vmatprep.subr.mxu0 0.0
    %1248 = vmatpush1.msra.mxu0 %v266
    %1249 = vmatprep.subr.mxu0 0.0
    %1250 = vmatpush1.msra.mxu0 0.0
    %1251 = vmatprep.subr.mxu0 0.0
    %1252 = vmatpush1.msra.mxu0 0.0
    %1253 = vmatprep.subr.mxu0 0.0
    %1254 = vmatpush1.msra.mxu0 0.0
    %1255 = vmatprep.subr.mxu0 0.0
    %1256 = vmatpush1.msra.mxu0 0.0
    %1257 = vmatprep.subr.mxu0 0.0
    %1258 = vmatpush1.msra.mxu0 0.0
    %1259 = vmatprep.subr.mxu0 0.0
    %1260 = vmatpush1.msra.mxu0 0.0
    %1261 = vmatprep.subr.mxu0 0.0
    %1262 = vmatpush1.msra.mxu0 0.0
    %1263 = vmatprep.subr.mxu0 0.0
    %1264 = vmatpush1.msra.mxu0 0.0
    %1265 = vmatprep.subr.mxu0 0.0
    %1266 = vmatpush1.msra.mxu0 0.0
    %1267 = vmatprep.subr.mxu0 0.0
    %1268 = vmatpush1.msra.mxu0 0.0
    %1269 = vmatprep.subr.mxu0 0.0
    %1270 = vmatpush1.msra.mxu0 0.0
    %1271 = vmatprep.subr.mxu0 0.0
    %1272 = vmatpush1.msra.mxu0 0.0
    %1273 = vmatprep.subr.mxu0 0.0
    %1274 = vmatpush1.msra.mxu0 0.0
    %1275 = vmatprep.subr.mxu0 0.0
    %1276 = vmatpush1.msra.mxu0 0.0
    %1277 = vmatprep.subr.mxu0 0.0
    %1278 = vmatpush1.msra.mxu0 0.0
    %1279 = vmatprep.subr.mxu0 0.0
    %1280 = vmatpush1.msra.mxu0 0.0
    %1281 = vmatprep.subr.mxu0 0.0
    %1282 = vmatpush1.msra.mxu0 0.0
    %1283 = vmatprep.subr.mxu0 0.0
    %1284 = vmatpush1.msra.mxu0 0.0
    %1285 = vmatprep.subr.mxu0 0.0
    %1286 = vmatpush1.msra.mxu0 0.0
    %1287 = vmatprep.subr.mxu0 0.0
    %1288 = vmatpush1.msra.mxu0 0.0
    %1289 = vmatprep.subr.mxu0 0.0
    %1290 = vmatpush1.msra.mxu0 0.0
    %1291 = vmatprep.subr.mxu0 0.0
    %1292 = vmatpush1.msra.mxu0 0.0
    %1293 = vmatprep.subr.mxu0 0.0
    %1294 = vmatpush1.msra.mxu0 0.0
    %1295 = vmatprep.subr.mxu0 0.0
    %1296 = vmatpush1.msra.mxu0 0.0
    %1297 = vmatprep.subr.mxu0 0.0
    %1298 = vmatpush1.msra.mxu0 0.0
    %1299 = vmatprep.subr.mxu0 0.0
    %1300 = vmatpush1.msra.mxu0 0.0
    %1301 = vmatprep.subr.mxu0 0.0
    %1302 = vmatpush1.msra.mxu0 0.0
    %1303 = vmatprep.subr.mxu0 0.0
    %1304 = vmatpush1.msra.mxu0 0.0
    %1305 = vmatprep.subr.mxu0 0.0
    %1306 = vmatpush1.msra.mxu0 0.0
    %1307 = vmatprep.subr.mxu0 0.0
    %1308 = vmatpush1.msra.mxu0 0.0
    %1309 = vmatprep.mubr.f32.mxu0 0.0
    %1310 = vmatmul.mubr.f32.gmra.mrb[0].mxu0 %v1243
    %v1311 = vpop.f32.mrb[0].mxu0
    %v1312 = vadd.f32 0.0, %v1311
    %v1313 = vpop.f32.mrb[0].mxu0
    %1314 = vdwg.mxu0
    %v1315 = vmul.f32 %v1312, %v1239
    %v1316 = vadd.f32 %v1167, %v1315
    %1317 = vrot.lane.b32.xlu0 %v242, 32
    %v1318 = vpop.permute.xlu0 %1317
    %v1319 = vsel %vm267, %v1318, 0
    %1321 = vmatprep.subr.mxu0 0.0
    %1322 = vmatpush1.msra.mxu0 %v245
    %1323 = vmatprep.subr.mxu0 0.0
    %1324 = vmatpush1.msra.mxu0 %v246
    %1325 = vmatprep.subr.mxu0 0.0
    %1326 = vmatpush1.msra.mxu0 %v247
    %1327 = vmatprep.subr.mxu0 0.0
    %1328 = vmatpush1.msra.mxu0 %v248
    %1329 = vmatprep.subr.mxu0 0.0
    %1330 = vmatpush1.msra.mxu0 0.0
    %1331 = vmatprep.subr.mxu0 0.0
    %1332 = vmatpush1.msra.mxu0 0.0
    %1333 = vmatprep.subr.mxu0 0.0
    %1334 = vmatpush1.msra.mxu0 0.0
    %1335 = vmatprep.subr.mxu0 0.0
    %1336 = vmatpush1.msra.mxu0 0.0
    %1337 = vmatprep.subr.mxu0 0.0
    %1338 = vmatpush1.msra.mxu0 0.0
    %1339 = vmatprep.subr.mxu0 0.0
    %1340 = vmatpush1.msra.mxu0 0.0
    %1341 = vmatprep.subr.mxu0 0.0
    %1342 = vmatpush1.msra.mxu0 0.0
    %1343 = vmatprep.subr.mxu0 0.0
    %1344 = vmatpush1.msra.mxu0 0.0
    %1345 = vmatprep.subr.mxu0 0.0
    %1346 = vmatpush1.msra.mxu0 0.0
    %1347 = vmatprep.subr.mxu0 0.0
    %1348 = vmatpush1.msra.mxu0 0.0
    %1349 = vmatprep.subr.mxu0 0.0
    %1350 = vmatpush1.msra.mxu0 0.0
    %1351 = vmatprep.subr.mxu0 0.0
    %1352 = vmatpush1.msra.mxu0 0.0
    %1353 = vmatprep.subr.mxu0 0.0
    %1354 = vmatpush1.msra.mxu0 0.0
    %1355 = vmatprep.subr.mxu0 0.0
    %1356 = vmatpush1.msra.mxu0 0.0
    %1357 = vmatprep.subr.mxu0 0.0
    %1358 = vmatpush1.msra.mxu0 0.0
    %1359 = vmatprep.subr.mxu0 0.0
    %1360 = vmatpush1.msra.mxu0 0.0
    %1361 = vmatprep.subr.mxu0 0.0
    %1362 = vmatpush1.msra.mxu0 0.0
    %1363 = vmatprep.subr.mxu0 0.0
    %1364 = vmatpush1.msra.mxu0 0.0
    %1365 = vmatprep.subr.mxu0 0.0
    %1366 = vmatpush1.msra.mxu0 0.0
    %1367 = vmatprep.subr.mxu0 0.0
    %1368 = vmatpush1.msra.mxu0 0.0
    %1369 = vmatprep.subr.mxu0 0.0
    %1370 = vmatpush1.msra.mxu0 0.0
    %1371 = vmatprep.subr.mxu0 0.0
    %1372 = vmatpush1.msra.mxu0 0.0
    %1373 = vmatprep.subr.mxu0 0.0
    %1374 = vmatpush1.msra.mxu0 0.0
    %1375 = vmatprep.subr.mxu0 0.0
    %1376 = vmatpush1.msra.mxu0 0.0
    %1377 = vmatprep.subr.mxu0 0.0
    %1378 = vmatpush1.msra.mxu0 0.0
    %1379 = vmatprep.subr.mxu0 0.0
    %1380 = vmatpush1.msra.mxu0 0.0
    %1381 = vmatprep.subr.mxu0 0.0
    %1382 = vmatpush1.msra.mxu0 0.0
    %1383 = vmatprep.subr.mxu0 0.0
    %1384 = vmatpush1.msra.mxu0 0.0
    %1385 = vmatprep.mubr.f32.mxu0 0.0
    %1386 = vmatmul.mubr.f32.gmra.mrb[0].mxu0 %v1319
    %v1387 = vpop.f32.mrb[0].mxu0
    %v1388 = vadd.f32 0.0, %v1387
    %v1389 = vpop.f32.mrb[0].mxu0
    %1390 = vdwg.mxu0
    %v1392 = vsel %vm944, %v870, 0
    %1394 = vmatprep.subr.mxu0 0.0
    %1395 = vmatpush1.msra.mxu0 %v265
    %1396 = vmatprep.subr.mxu0 0.0
    %1397 = vmatpush1.msra.mxu0 %v266
    %1398 = vmatprep.subr.mxu0 0.0
    %1399 = vmatpush1.msra.mxu0 0.0
    %1400 = vmatprep.subr.mxu0 0.0
    %1401 = vmatpush1.msra.mxu0 0.0
    %1402 = vmatprep.subr.mxu0 0.0
    %1403 = vmatpush1.msra.mxu0 0.0
    %1404 = vmatprep.subr.mxu0 0.0
    %1405 = vmatpush1.msra.mxu0 0.0
    %1406 = vmatprep.subr.mxu0 0.0
    %1407 = vmatpush1.msra.mxu0 0.0
    %1408 = vmatprep.subr.mxu0 0.0
    %1409 = vmatpush1.msra.mxu0 0.0
    %1410 = vmatprep.subr.mxu0 0.0
    %1411 = vmatpush1.msra.mxu0 0.0
    %1412 = vmatprep.subr.mxu0 0.0
    %1413 = vmatpush1.msra.mxu0 0.0
    %1414 = vmatprep.subr.mxu0 0.0
    %1415 = vmatpush1.msra.mxu0 0.0
    %1416 = vmatprep.subr.mxu0 0.0
    %1417 = vmatpush1.msra.mxu0 0.0
    %1418 = vmatprep.subr.mxu0 0.0
    %1419 = vmatpush1.msra.mxu0 0.0
    %1420 = vmatprep.subr.mxu0 0.0
    %1421 = vmatpush1.msra.mxu0 0.0
    %1422 = vmatprep.subr.mxu0 0.0
    %1423 = vmatpush1.msra.mxu0 0.0
    %1424 = vmatprep.subr.mxu0 0.0
    %1425 = vmatpush1.msra.mxu0 0.0
    %1426 = vmatprep.subr.mxu0 0.0
    %1427 = vmatpush1.msra.mxu0 0.0
    %1428 = vmatprep.subr.mxu0 0.0
    %1429 = vmatpush1.msra.mxu0 0.0
    %1430 = vmatprep.subr.mxu0 0.0
    %1431 = vmatpush1.msra.mxu0 0.0
    %1432 = vmatprep.subr.mxu0 0.0
    %1433 = vmatpush1.msra.mxu0 0.0
    %1434 = vmatprep.subr.mxu0 0.0
    %1435 = vmatpush1.msra.mxu0 0.0
    %1436 = vmatprep.subr.mxu0 0.0
    %1437 = vmatpush1.msra.mxu0 0.0
    %1438 = vmatprep.subr.mxu0 0.0
    %1439 = vmatpush1.msra.mxu0 0.0
    %1440 = vmatprep.subr.mxu0 0.0
    %1441 = vmatpush1.msra.mxu0 0.0
    %1442 = vmatprep.subr.mxu0 0.0
    %1443 = vmatpush1.msra.mxu0 0.0
    %1444 = vmatprep.subr.mxu0 0.0
    %1445 = vmatpush1.msra.mxu0 0.0
    %1446 = vmatprep.subr.mxu0 0.0
    %1447 = vmatpush1.msra.mxu0 0.0
    %1448 = vmatprep.subr.mxu0 0.0
    %1449 = vmatpush1.msra.mxu0 0.0
    %1450 = vmatprep.subr.mxu0 0.0
    %1451 = vmatpush1.msra.mxu0 0.0
    %1452 = vmatprep.subr.mxu0 0.0
    %1453 = vmatpush1.msra.mxu0 0.0
    %1454 = vmatprep.subr.mxu0 0.0
    %1455 = vmatpush1.msra.mxu0 0.0
    %1456 = vmatprep.subr.mxu0 0.0
    %1457 = vmatpush1.msra.mxu0 0.0
    %1458 = vmatprep.mubr.f32.mxu0 0.0
    %1459 = vmatmul.mubr.f32.gmra.mrb[0].mxu0 %v1392
    %v1460 = vpop.f32.mrb[0].mxu0
    %v1461 = vadd.f32 0.0, %v1460
    %v1462 = vpop.f32.mrb[0].mxu0
    %1463 = vdwg.mxu0
    %v1464 = vmul.f32 %v1461, %v1388
    %v1465 = vadd.f32 %v1316, %v1464
    %1466 = vst [vmem:[#allocation5] sm:$0xf] %v1465
    // Predicated region
    $region30: #{tpu_custom_call.1} parent=1 // pred_check
      _
    $region31: #{tpu_custom_call.1} parent=1 // pred_check_branch
      %1468 = sbr.rel (0) target = $region33
    $region32: #{tpu_custom_call.1} parent=1 // pred_region
      %s1470 = ssub.s32 64, 64
      %1471 = vsyncadd [#allocation4], %s1470
      %s1473 = sshll.u32 [#allocation5], 4
      %s1474 = int_to_ptr.vmem [resolvable:$true] %s1473
      %1476 = dma.vmem_to_hbm [thread:$0]  %s1474, 64, %s6, [#allocation4]
    $region33: #{tpu_custom_call.1} parent=1 // pred_fallthru
      _
    // Predicated region
    $region34: #{tpu_custom_call.1} parent=1 // pred_check
      _
    $region35: #{tpu_custom_call.1} parent=1 // pred_check_branch
      %1478 = sbr.rel (0) target = $region37
    $region36: #{tpu_custom_call.1} parent=1 // pred_region
      %1479 = dma.done [#allocation4], 64
    $region37: #{tpu_custom_call.1} parent=1 // pred_fallthru
      _
    %1480 = vsyncpa [#allocation3], 1
    %1481 = vsyncpa [#allocation4], 1

</llo_original>
